<compile_context>
chip_gen: v6e
topology: v6e:2x2x1
jax: 0.10.0
libtpu: 0.0.40
codegen_flags: <defaults>
</compile_context>

<pallas_src>
import jax
import jax.numpy as jnp
from jax.experimental import pallas as pl
from jax.experimental.pallas import tpu as pltpu


def _round_up(x, m):
    return ((x + m - 1) // m) * m


def eam_encoder_kernel(x_ref,
                       w1_ref, b1_ref,
                       w2_ref, b2_ref,
                       w3_ref, b3_ref,
                       w4_ref, b4_ref,
                       w5_ref, b5_ref,
                       o_ref):
    """Fused 5-layer encoder MLP for one batch tile.

    Matmul operands are bf16 (MXU-native), accumulation is f32; bias add and
    ReLU run in f32 on the VPU, then activations are narrowed back to bf16.
    """
    def layer(h, w_ref, b_ref, relu):
        acc = jnp.dot(h, w_ref[...], preferred_element_type=jnp.float32)
        acc = acc + b_ref[...]
        if relu:
            acc = jnp.maximum(acc, 0.0).astype(jnp.bfloat16)
        return acc

    h = x_ref[...].astype(jnp.bfloat16)  # f32 -> bf16 cast on the VPU
    h = layer(h, w1_ref, b1_ref, True)   # 784 -> 256
    h = layer(h, w2_ref, b2_ref, True)   # 256 -> 128
    h = layer(h, w3_ref, b3_ref, True)   # 128 -> 128
    h = layer(h, w4_ref, b4_ref, True)   # 128 -> 128 (96 zero-padded)
    h = layer(h, w5_ref, b5_ref, False)  # 128 -> 128 (30 zero-padded), f32 acc
    o_ref[...] = h.astype(o_ref.dtype)


def pad_params(params, n_features):
    """Pad each layer so its K matches the incoming activation width and its
    N is a multiple of 128 (lane-dense outputs).  The first layer's K is left
    at n_features (no 784->896 padding); padded rows/cols are zero so the
    result is unchanged."""
    padded = []
    prev = n_features
    for w, b in params:
        k, n = w.shape
        assert k <= prev
        kp = prev
        np_ = _round_up(n, 128)
        if kp == k and np_ == n:
            wp, bp = w, b
        else:
            wp = jnp.zeros((kp, np_), jnp.float32).at[:k, :n].set(w)
            bp = jnp.zeros((1, np_), jnp.float32).at[:, :n].set(b)
        padded.append((wp, bp))
        prev = np_
    return padded


def eam_forward(x, params, *, batch_tile=512):
    """Encoder forward.

    params: list of (W, b) pairs with W of shape (in, out), b of shape (1, out).
    Returns (B, nLatent) float32.
    """
    B, nFeatures = x.shape
    nLatent = params[-1][0].shape[1]

    padded_params = pad_params(params, nFeatures)
    N_out_pad = padded_params[-1][0].shape[1]

    # bf16 matmul operands, f32 biases.
    flat = []
    for w, b in padded_params:
        flat.append(w.astype(jnp.bfloat16))
        flat.append(b.astype(jnp.float32))

    # Batch tile: multiple of 8; capped so the grid has >= 2 steps when the
    # batch is big enough (lets v7x shard the "parallel" axis over both TCs).
    tile = max(8, _round_up(min(batch_tile, B), 8))
    if B > 8:
        tile = min(tile, _round_up(pl.cdiv(B, 2), 8))
    grid = (pl.cdiv(B, tile),)

    # x is read raw (f32, unpadded): last-dim block = 784 = full array extent.
    in_specs = [pl.BlockSpec((tile, nFeatures), lambda i: (i, 0))]
    # Weights/biases: full-array blocks with a constant index map; Pallas keeps
    # them VMEM-resident (no re-DMA when the block index repeats).
    in_specs += [pl.BlockSpec(a.shape, lambda i: (0, 0)) for a in flat]
    out_spec = pl.BlockSpec((tile, N_out_pad), lambda i: (i, 0))

    # Advisory cost estimate for XLA scheduling (padded dims; harmless).
    flops = 0
    bytes_accessed = int(x.size) * 4 + B * N_out_pad * 4
    for w, b in padded_params:
        flops += 2 * B * int(w.shape[0]) * int(w.shape[1])
        bytes_accessed += int(w.size) * 2 + int(b.size) * 4
    cost = pl.CostEstimate(flops=flops, transcendentals=0,
                           bytes_accessed=bytes_accessed)

    out = pl.pallas_call(
        eam_encoder_kernel,
        out_shape=jax.ShapeDtypeStruct((B, N_out_pad), jnp.float32),
        grid_spec=pltpu.PrefetchScalarGridSpec(
            num_scalar_prefetch=0,
            grid=grid,
            in_specs=in_specs,
            out_specs=out_spec,
        ),
        compiler_params=pltpu.CompilerParams(
            dimension_semantics=("parallel",),
        ),
        cost_estimate=cost,
    )(x, *flat)

    # Strip the lane padding of the latent dim.
    return out[:, :nLatent]


def init_linear(key, fan_in, fan_out):
    """Deterministic init mimicking torch.nn.Linear default (U[-1/sqrt(fan_in), +])."""
    kw, kb = jax.random.split(key)
    bound = 1.0 / jnp.sqrt(fan_in)
    w = jax.random.uniform(kw, (fan_in, fan_out), jnp.float32, -bound, bound)
    b = jax.random.uniform(kb, (1, fan_out), jnp.float32, -bound, bound)
    return w, b


def make_encoder_params(key, nFeatures=28 * 28, nLatent=30):
    dims = [nFeatures, 256, 128, 128, 96, nLatent]
    keys = jax.random.split(key, len(dims) - 1)
    return [init_linear(k, dims[i], dims[i + 1]) for i, k in enumerate(keys)]


def eam_forward_ref_f32(x, params):
    """Pure f32 reference of the encoder forward."""
    h = x
    n = len(params)
    for i, (w, b) in enumerate(params):
        h = h @ w + b
        if i < n - 1:
            h = jnp.maximum(h, 0.0)
    return h


def eam_forward_ref_mixed(x, params):
    """Reference matching the kernel's precision: bf16 operands, f32 accumulate,
    bf16 inter-layer activations."""
    h = x.astype(jnp.bfloat16)
    n = len(params)
    for i, (w, b) in enumerate(params):
        acc = jnp.dot(h, w.astype(jnp.bfloat16),
                      preferred_element_type=jnp.float32) + b
        if i < n - 1:
            h = jnp.maximum(acc, 0.0).astype(jnp.bfloat16)
        else:
            h = acc
    return h


if __name__ == "__main__":
    key = jax.random.PRNGKey(0)
    k_x, k_p = jax.random.split(key)

    nFeatures = 28 * 28   # 784, as in the module default
    nLatent = 30
    batch = 64            # module's training batch size; small demo batch

    x = jax.random.uniform(k_x, (batch, nFeatures), jnp.float32)  # image-like in [0,1)
    params = make_encoder_params(k_p, nFeatures, nLatent)

    out = eam_forward(x, params)
    out = jax.block_until_ready(out)
    assert out.shape == (batch, nLatent)

    # Tight check against a reference using the same mixed precision as the kernel.
    ref_mixed = eam_forward_ref_mixed(x, params)
    assert jnp.allclose(out, ref_mixed, atol=1e-2, rtol=1e-2), \
        "Pallas output mismatch vs mixed-precision reference"

    # Loose check against the pure-f32 reference (bf16 operand rounding only).
    ref_f32 = eam_forward_ref_f32(x, params)
    assert jnp.allclose(out, ref_f32, atol=7e-2, rtol=7e-2), \
        "Pallas output mismatch vs f32 reference"

    print("KERNEL_OK")
</pallas_src>

<mosaic_0001>
module attributes {stable_mosaic.version = 11 : i64} {
  func.func @eam_encoder_kernel(%arg0: i32, %arg1: memref<32x784xf32, #tpu.memory_space<vmem>>, %arg2: memref<784x256xbf16, #tpu.memory_space<vmem>>, %arg3: memref<1x256xf32, #tpu.memory_space<vmem>>, %arg4: memref<256x128xbf16, #tpu.memory_space<vmem>>, %arg5: memref<1x128xf32, #tpu.memory_space<vmem>>, %arg6: memref<128x128xbf16, #tpu.memory_space<vmem>>, %arg7: memref<1x128xf32, #tpu.memory_space<vmem>>, %arg8: memref<128x128xbf16, #tpu.memory_space<vmem>>, %arg9: memref<1x128xf32, #tpu.memory_space<vmem>>, %arg10: memref<128x128xbf16, #tpu.memory_space<vmem>>, %arg11: memref<1x128xf32, #tpu.memory_space<vmem>>, %arg12: memref<32x128xf32, #tpu.memory_space<vmem>>) attributes {dimension_semantics = [#tpu.dimension_semantics<parallel>], iteration_bounds = array<i64: 2>, scalar_prefetch = 0 : i64, scratch_operands = 0 : i64, tpu.core_type = #tpu.core_type<tc>, window_params = [{transform_indices = @transform_0, window_bounds = array<i64: 32, 784>}, {pipeline_mode = #tpu.pipeline_mode<synchronous>, transform_indices = @transform_1, window_bounds = array<i64: 784, 256>}, {pipeline_mode = #tpu.pipeline_mode<synchronous>, transform_indices = @transform_2, window_bounds = array<i64: 1, 256>}, {pipeline_mode = #tpu.pipeline_mode<synchronous>, transform_indices = @transform_3, window_bounds = array<i64: 256, 128>}, {pipeline_mode = #tpu.pipeline_mode<synchronous>, transform_indices = @transform_4, window_bounds = array<i64: 1, 128>}, {pipeline_mode = #tpu.pipeline_mode<synchronous>, transform_indices = @transform_5, window_bounds = array<i64: 128, 128>}, {pipeline_mode = #tpu.pipeline_mode<synchronous>, transform_indices = @transform_6, window_bounds = array<i64: 1, 128>}, {pipeline_mode = #tpu.pipeline_mode<synchronous>, transform_indices = @transform_7, window_bounds = array<i64: 128, 128>}, {pipeline_mode = #tpu.pipeline_mode<synchronous>, transform_indices = @transform_8, window_bounds = array<i64: 1, 128>}, {pipeline_mode = #tpu.pipeline_mode<synchronous>, transform_indices = @transform_9, window_bounds = array<i64: 128, 128>}, {pipeline_mode = #tpu.pipeline_mode<synchronous>, transform_indices = @transform_10, window_bounds = array<i64: 1, 128>}, {transform_indices = @transform_11, window_bounds = array<i64: 32, 128>}]} {
    %c0 = arith.constant 0 : index
    %c0_0 = arith.constant 0 : index
    %0 = vector.load %arg1[%c0, %c0_0] : memref<32x784xf32, #tpu.memory_space<vmem>>, vector<32x784xf32>
    %1 = arith.truncf %0 : vector<32x784xf32> to vector<32x784xbf16>
    %c0_1 = arith.constant 0 : index
    %c0_2 = arith.constant 0 : index
    %2 = vector.load %arg2[%c0_1, %c0_2] : memref<784x256xbf16, #tpu.memory_space<vmem>>, vector<784x256xbf16>
    %cst = arith.constant dense<0.000000e+00> : vector<32x256xf32>
    %3 = tpu.matmul %1, %2, %cst {dimension_numbers = #tpu.dot_dimension_numbers<[1], [0], [0], [1], [0, 0, 1, 1], [], []>} : vector<32x784xbf16>, vector<784x256xbf16>, vector<32x256xf32> -> vector<32x256xf32>
    %c0_3 = arith.constant 0 : index
    %c0_4 = arith.constant 0 : index
    %4 = vector.load %arg3[%c0_3, %c0_4] : memref<1x256xf32, #tpu.memory_space<vmem>>, vector<1x256xf32>
    %5 = vector.broadcast %4 : vector<1x256xf32> to vector<32x256xf32>
    %6 = arith.addf %3, %5 : vector<32x256xf32>
    %cst_5 = arith.constant 0.000000e+00 : f32
    %7 = vector.broadcast %cst_5 : f32 to vector<32x256xf32>
    %8 = arith.maximumf %6, %7 : vector<32x256xf32>
    %9 = arith.truncf %8 : vector<32x256xf32> to vector<32x256xbf16>
    %c0_6 = arith.constant 0 : index
    %c0_7 = arith.constant 0 : index
    %10 = vector.load %arg4[%c0_6, %c0_7] : memref<256x128xbf16, #tpu.memory_space<vmem>>, vector<256x128xbf16>
    %cst_8 = arith.constant dense<0.000000e+00> : vector<32x128xf32>
    %11 = tpu.matmul %9, %10, %cst_8 {dimension_numbers = #tpu.dot_dimension_numbers<[1], [0], [0], [1], [0, 0, 1, 1], [], []>} : vector<32x256xbf16>, vector<256x128xbf16>, vector<32x128xf32> -> vector<32x128xf32>
    %c0_9 = arith.constant 0 : index
    %c0_10 = arith.constant 0 : index
    %12 = vector.load %arg5[%c0_9, %c0_10] : memref<1x128xf32, #tpu.memory_space<vmem>>, vector<1x128xf32>
    %13 = vector.broadcast %12 : vector<1x128xf32> to vector<32x128xf32>
    %14 = arith.addf %11, %13 : vector<32x128xf32>
    %cst_11 = arith.constant 0.000000e+00 : f32
    %15 = vector.broadcast %cst_11 : f32 to vector<32x128xf32>
    %16 = arith.maximumf %14, %15 : vector<32x128xf32>
    %17 = arith.truncf %16 : vector<32x128xf32> to vector<32x128xbf16>
    %c0_12 = arith.constant 0 : index
    %c0_13 = arith.constant 0 : index
    %18 = vector.load %arg6[%c0_12, %c0_13] : memref<128x128xbf16, #tpu.memory_space<vmem>>, vector<128x128xbf16>
    %cst_14 = arith.constant dense<0.000000e+00> : vector<32x128xf32>
    %19 = tpu.matmul %17, %18, %cst_14 {dimension_numbers = #tpu.dot_dimension_numbers<[1], [0], [0], [1], [0, 0, 1, 1], [], []>} : vector<32x128xbf16>, vector<128x128xbf16>, vector<32x128xf32> -> vector<32x128xf32>
    %c0_15 = arith.constant 0 : index
    %c0_16 = arith.constant 0 : index
    %20 = vector.load %arg7[%c0_15, %c0_16] : memref<1x128xf32, #tpu.memory_space<vmem>>, vector<1x128xf32>
    %21 = vector.broadcast %20 : vector<1x128xf32> to vector<32x128xf32>
    %22 = arith.addf %19, %21 : vector<32x128xf32>
    %cst_17 = arith.constant 0.000000e+00 : f32
    %23 = vector.broadcast %cst_17 : f32 to vector<32x128xf32>
    %24 = arith.maximumf %22, %23 : vector<32x128xf32>
    %25 = arith.truncf %24 : vector<32x128xf32> to vector<32x128xbf16>
    %c0_18 = arith.constant 0 : index
    %c0_19 = arith.constant 0 : index
    %26 = vector.load %arg8[%c0_18, %c0_19] : memref<128x128xbf16, #tpu.memory_space<vmem>>, vector<128x128xbf16>
    %cst_20 = arith.constant dense<0.000000e+00> : vector<32x128xf32>
    %27 = tpu.matmul %25, %26, %cst_20 {dimension_numbers = #tpu.dot_dimension_numbers<[1], [0], [0], [1], [0, 0, 1, 1], [], []>} : vector<32x128xbf16>, vector<128x128xbf16>, vector<32x128xf32> -> vector<32x128xf32>
    %c0_21 = arith.constant 0 : index
    %c0_22 = arith.constant 0 : index
    %28 = vector.load %arg9[%c0_21, %c0_22] : memref<1x128xf32, #tpu.memory_space<vmem>>, vector<1x128xf32>
    %29 = vector.broadcast %28 : vector<1x128xf32> to vector<32x128xf32>
    %30 = arith.addf %27, %29 : vector<32x128xf32>
    %cst_23 = arith.constant 0.000000e+00 : f32
    %31 = vector.broadcast %cst_23 : f32 to vector<32x128xf32>
    %32 = arith.maximumf %30, %31 : vector<32x128xf32>
    %33 = arith.truncf %32 : vector<32x128xf32> to vector<32x128xbf16>
    %c0_24 = arith.constant 0 : index
    %c0_25 = arith.constant 0 : index
    %34 = vector.load %arg10[%c0_24, %c0_25] : memref<128x128xbf16, #tpu.memory_space<vmem>>, vector<128x128xbf16>
    %cst_26 = arith.constant dense<0.000000e+00> : vector<32x128xf32>
    %35 = tpu.matmul %33, %34, %cst_26 {dimension_numbers = #tpu.dot_dimension_numbers<[1], [0], [0], [1], [0, 0, 1, 1], [], []>} : vector<32x128xbf16>, vector<128x128xbf16>, vector<32x128xf32> -> vector<32x128xf32>
    %c0_27 = arith.constant 0 : index
    %c0_28 = arith.constant 0 : index
    %36 = vector.load %arg11[%c0_27, %c0_28] : memref<1x128xf32, #tpu.memory_space<vmem>>, vector<1x128xf32>
    %37 = vector.broadcast %36 : vector<1x128xf32> to vector<32x128xf32>
    %38 = arith.addf %35, %37 : vector<32x128xf32>
    %c0_29 = arith.constant 0 : index
    %c0_30 = arith.constant 0 : index
    %39 = vector.load %arg12[%c0_29, %c0_30] : memref<32x128xf32, #tpu.memory_space<vmem>>, vector<32x128xf32>
    tpu.vector_store %arg12[%c0_29, %c0_30], %38 {strides = array<i32>} : memref<32x128xf32, #tpu.memory_space<vmem>>, vector<32x128xf32>,
    return
  }
  func.func @transform_0(%arg0: i32) -> (i32, i32) {
    %c0_i32 = arith.constant 0 : i32
    %c0_i32_0 = arith.constant 0 : i32
    return %arg0, %c0_i32 : i32, i32
  }
  func.func @transform_1(%arg0: i32) -> (i32, i32) {
    %c0_i32 = arith.constant 0 : i32
    %c0_i32_0 = arith.constant 0 : i32
    %c0_i32_1 = arith.constant 0 : i32
    return %c0_i32, %c0_i32_0 : i32, i32
  }
  func.func @transform_2(%arg0: i32) -> (i32, i32) {
    %c0_i32 = arith.constant 0 : i32
    %c0_i32_0 = arith.constant 0 : i32
    %c0_i32_1 = arith.constant 0 : i32
    return %c0_i32, %c0_i32_0 : i32, i32
  }
  func.func @transform_3(%arg0: i32) -> (i32, i32) {
    %c0_i32 = arith.constant 0 : i32
    %c0_i32_0 = arith.constant 0 : i32
    %c0_i32_1 = arith.constant 0 : i32
    return %c0_i32, %c0_i32_0 : i32, i32
  }
  func.func @transform_4(%arg0: i32) -> (i32, i32) {
    %c0_i32 = arith.constant 0 : i32
    %c0_i32_0 = arith.constant 0 : i32
    %c0_i32_1 = arith.constant 0 : i32
    return %c0_i32, %c0_i32_0 : i32, i32
  }
  func.func @transform_5(%arg0: i32) -> (i32, i32) {
    %c0_i32 = arith.constant 0 : i32
    %c0_i32_0 = arith.constant 0 : i32
    %c0_i32_1 = arith.constant 0 : i32
    return %c0_i32, %c0_i32_0 : i32, i32
  }
  func.func @transform_6(%arg0: i32) -> (i32, i32) {
    %c0_i32 = arith.constant 0 : i32
    %c0_i32_0 = arith.constant 0 : i32
    %c0_i32_1 = arith.constant 0 : i32
    return %c0_i32, %c0_i32_0 : i32, i32
  }
  func.func @transform_7(%arg0: i32) -> (i32, i32) {
    %c0_i32 = arith.constant 0 : i32
    %c0_i32_0 = arith.constant 0 : i32
    %c0_i32_1 = arith.constant 0 : i32
    return %c0_i32, %c0_i32_0 : i32, i32
  }
  func.func @transform_8(%arg0: i32) -> (i32, i32) {
    %c0_i32 = arith.constant 0 : i32
    %c0_i32_0 = arith.constant 0 : i32
    %c0_i32_1 = arith.constant 0 : i32
    return %c0_i32, %c0_i32_0 : i32, i32
  }
  func.func @transform_9(%arg0: i32) -> (i32, i32) {
    %c0_i32 = arith.constant 0 : i32
    %c0_i32_0 = arith.constant 0 : i32
    %c0_i32_1 = arith.constant 0 : i32
    return %c0_i32, %c0_i32_0 : i32, i32
  }
  func.func @transform_10(%arg0: i32) -> (i32, i32) {
    %c0_i32 = arith.constant 0 : i32
    %c0_i32_0 = arith.constant 0 : i32
    %c0_i32_1 = arith.constant 0 : i32
    return %c0_i32, %c0_i32_0 : i32, i32
  }
  func.func @transform_11(%arg0: i32) -> (i32, i32) {
    %c0_i32 = arith.constant 0 : i32
    %c0_i32_0 = arith.constant 0 : i32
    return %arg0, %c0_i32 : i32, i32
  }
}

</mosaic_0001>

<llo_original>
// kernel: tpu_custom_call.1
$region0: #{tpu_custom_call.1}
  #allocation0 [shape = 'u32[]', space=smem, size = 0x4, offset = 0x4, fixed_abs, tag = 'smem constant byte address 0x4 - core index']
  #allocation1 [shape = 'u32[144,128]{1,0:T(1,128)}', space=vmem, size = 0x12000, scoped, tag = 'internal scratch']
  %s0 = inlined_call_operand.hbm [shape: f32[64,784], index: 0, kind: input, shape index: {}]
  %s1 = inlined_call_operand.hbm [shape: bf16[784,256], index: 1, kind: input, shape index: {}]
  %s2 = inlined_call_operand.vmem [shape: f32[1,256], index: 2, kind: input, shape index: {}]
  %s3 = inlined_call_operand.hbm [shape: bf16[256,128], index: 3, kind: input, shape index: {}]
  %s4 = inlined_call_operand.vmem [shape: f32[1,128], index: 4, kind: input, shape index: {}]
  %s5 = inlined_call_operand.hbm [shape: bf16[128,128], index: 5, kind: input, shape index: {}]
  %s6 = inlined_call_operand.vmem [shape: f32[1,128], index: 6, kind: input, shape index: {}]
  %s7 = inlined_call_operand.hbm [shape: bf16[128,128], index: 7, kind: input, shape index: {}]
  %s8 = inlined_call_operand.vmem [shape: f32[1,128], index: 8, kind: input, shape index: {}]
  %s9 = inlined_call_operand.hbm [shape: bf16[128,128], index: 9, kind: input, shape index: {}]
  %s10 = inlined_call_operand.vmem [shape: f32[1,128], index: 10, kind: input, shape index: {}]
  %s11 = inlined_call_operand.hbm [shape: f32[64,128], index: 11, kind: output, shape index: {}]
  %s12 = sld [smem:[#allocation0]]
  $region101: #{tpu_custom_call.1} parent=0
    _
  %s14 = ssub.s32 1, %s12
  %s15 = scalar_select 0, %s14, %s12
  $region1: #{tpu_custom_call.1} parent=0
    #allocation2 [shape = 'u8[229376]{0}', space=vmem, size = 0x38000, scoped, tag = 'input window, operand 0']
    #allocation3 [shape = 's32[2]{0}', space=sflag, size = 0x8, scoped, tag = 'scoped memory for tpu_custom_call.1']
    #allocation4 [shape = 's32[2]{0}', space=sflag, size = 0x8, scoped, tag = 'scoped memory for tpu_custom_call.1']
    #allocation5 [shape = 'u8[401408]{0}', space=vmem, size = 0x62000, scoped, tag = 'input window, operand 1, single buffered']
    #allocation6 [shape = 's32[1]{0}', space=sflag, size = 0x4, scoped, tag = 'scoped memory for tpu_custom_call.1']
    #allocation7 [shape = 'u8[65536]{0}', space=vmem, size = 0x10000, scoped, tag = 'input window, operand 3, single buffered']
    #allocation8 [shape = 'u8[32768]{0}', space=vmem, size = 0x8000, scoped, tag = 'input window, operand 5, single buffered']
    #allocation9 [shape = 's32[1]{0}', space=sflag, size = 0x4, scoped, tag = 'scoped memory for tpu_custom_call.1']
    #allocation10 [shape = 'u8[32768]{0}', space=vmem, size = 0x8000, scoped, tag = 'input window, operand 7, single buffered']
    #allocation11 [shape = 'u8[32768]{0}', space=vmem, size = 0x8000, scoped, tag = 'input window, operand 9, single buffered']
    #allocation12 [shape = 's32[1]{0}', space=sflag, size = 0x4, scoped, tag = 'scoped memory for tpu_custom_call.1']
    #allocation13 [shape = 'u8[32768]{0}', space=vmem, size = 0x8000, scoped, tag = 'output window, operand 0']
    %16 = vsyncpa [#allocation3], 0
    %s17 = scalar_lea.sflag [#allocation3], 1
    %18 = vsyncpa %s17, 0
    %19 = vsyncpa [#allocation6], 0
    %20 = vsyncpa [#allocation9], 0
    %21 = vsyncpa [#allocation12], 0
    %22 = vsyncpa [#allocation4], 0
    %s23 = scalar_lea.sflag [#allocation4], 1
    %24 = vsyncpa %s23, 0
    loop: start=0, step=1, limit=4
    $region2: #{tpu_custom_call.1} parent=1 // loop_pre_header
      _
    $region3: #{tpu_custom_call.1} parent=1 // loop_header
      %s26 = sphi 0, %s30
      %p27 = scmp.ge.s32.totalorder %s26, 4
      %s36 = sphi 0, %s38
      %s39 = sphi 0, %s36
      %s40 = sphi 0, %s39
      %s56 = sphi 0, %s40
      %s60 = sphi 0, %s60
      %s62 = sphi 0, %s60
      %s63 = sphi 0, %s62
      %s77 = sphi 0, %s63
      %s81 = sphi 0, %s81
      %s83 = sphi 0, %s81
      %s84 = sphi 0, %s83
      %s98 = sphi 0, %s84
      %s102 = sphi 0, %s102
      %s104 = sphi 0, %s102
      %s105 = sphi 0, %s104
      %s119 = sphi 0, %s105
      %s123 = sphi 0, %s123
      %s125 = sphi 0, %s123
      %s126 = sphi 0, %s125
      %s140 = sphi 0, %s126
      %s144 = sphi 0, %s144
      %s146 = sphi 0, %s144
      %s147 = sphi 0, %s146
      %s161 = sphi 0, %s147
      %s165 = sphi 0, %s165
      %s167 = sphi 0, %s165
      %s168 = sphi 0, %s167
      %s182 = sphi 0, %s168
      %s186 = sphi 0, %s186
      %s188 = sphi 0, %s186
      %s189 = sphi 0, %s188
      %s203 = sphi 0, %s189
      %s207 = sphi 0, %s207
      %s209 = sphi 0, %s207
      %s210 = sphi 0, %s209
      %s224 = sphi 0, %s210
      %s228 = sphi 0, %s228
      %s230 = sphi 0, %s228
      %s231 = sphi 0, %s230
      %s245 = sphi 0, %s231
      %s249 = sphi 0, %s249
      %s251 = sphi 0, %s249
      %s252 = sphi 0, %s251
      %s266 = sphi 0, %s252
      %s272 = sphi 0, %s274
      %s275 = sphi 0, %s272
      %s276 = sphi 0, %s275
      %s292 = sphi 0, %s276
    $region4: #{tpu_custom_call.1} parent=1 // loop_header_branch
      %29 = sbr.rel (%p27) target = $region8
    $region5: #{tpu_custom_call.1} parent=1 // loop_body
      %s31 = ssub.s32 %s26, 1
      %s32 = ssub.s32 %s26, 2
      %s33 = sadd.s32 %s26, 1
      %s34 = ssub.s32 %s26, %s33
      %p35 = scmp.eq.s32.totalorder %s34, 0
      %s37 = sadd.s32 %s36, 1
      %s38 = scalar_select %p35, %s36, %s37
      %p41 = pneg %p35
      %p42 = scmp.eq.s32.totalorder %s26, 1
      %p43 = por %p41, %p42
      %p44 = scmp.ne.s32.totalorder %s36, %s39
      %p45 = scmp.eq.s32.totalorder %s26, 0
      %p46 = por %p44, %p45
      %p47 = scmp.ne.s32.totalorder %s36, %s39
      %p48 = scmp.eq.s32.totalorder %s31, 1
      %p49 = por %p47, %p48
      %p50 = scmp.ne.s32.totalorder %s39, %s40
      %p51 = scmp.eq.s32.totalorder %s31, 0
      %p52 = por %p50, %p51
      %p53 = scmp.ne.s32.totalorder %s39, %s40
      %p54 = scmp.eq.s32.totalorder %s32, 1
      %p55 = por %p53, %p54
      %p57 = scmp.ne.s32.totalorder %s40, %s56
      %p58 = scmp.eq.s32.totalorder %s32, 0
      %p59 = por %p57, %p58
      %s61 = sadd.s32 %s60, 1
      %p64 = scmp.eq.s32.totalorder %s26, 1
      %p65 = scmp.ne.s32.totalorder %s60, %s62
      %p66 = scmp.eq.s32.totalorder %s26, 0
      %p67 = por %p65, %p66
      %p68 = scmp.ne.s32.totalorder %s60, %s62
      %p69 = scmp.eq.s32.totalorder %s31, 1
      %p70 = por %p68, %p69
      %p71 = scmp.ne.s32.totalorder %s62, %s63
      %p72 = scmp.eq.s32.totalorder %s31, 0
      %p73 = por %p71, %p72
      %p74 = scmp.ne.s32.totalorder %s62, %s63
      %p75 = scmp.eq.s32.totalorder %s32, 1
      %p76 = por %p74, %p75
      %p78 = scmp.ne.s32.totalorder %s63, %s77
      %p79 = scmp.eq.s32.totalorder %s32, 0
      %p80 = por %p78, %p79
      %s82 = sadd.s32 %s81, 1
      %p85 = scmp.eq.s32.totalorder %s26, 1
      %p86 = scmp.ne.s32.totalorder %s81, %s83
      %p87 = scmp.eq.s32.totalorder %s26, 0
      %p88 = por %p86, %p87
      %p89 = scmp.ne.s32.totalorder %s81, %s83
      %p90 = scmp.eq.s32.totalorder %s31, 1
      %p91 = por %p89, %p90
      %p92 = scmp.ne.s32.totalorder %s83, %s84
      %p93 = scmp.eq.s32.totalorder %s31, 0
      %p94 = por %p92, %p93
      %p95 = scmp.ne.s32.totalorder %s83, %s84
      %p96 = scmp.eq.s32.totalorder %s32, 1
      %p97 = por %p95, %p96
      %p99 = scmp.ne.s32.totalorder %s84, %s98
      %p100 = scmp.eq.s32.totalorder %s32, 0
      %p101 = por %p99, %p100
      %s103 = sadd.s32 %s102, 1
      %p106 = scmp.eq.s32.totalorder %s26, 1
      %p107 = scmp.ne.s32.totalorder %s102, %s104
      %p108 = scmp.eq.s32.totalorder %s26, 0
      %p109 = por %p107, %p108
      %p110 = scmp.ne.s32.totalorder %s102, %s104
      %p111 = scmp.eq.s32.totalorder %s31, 1
      %p112 = por %p110, %p111
      %p113 = scmp.ne.s32.totalorder %s104, %s105
      %p114 = scmp.eq.s32.totalorder %s31, 0
      %p115 = por %p113, %p114
      %p116 = scmp.ne.s32.totalorder %s104, %s105
      %p117 = scmp.eq.s32.totalorder %s32, 1
      %p118 = por %p116, %p117
      %p120 = scmp.ne.s32.totalorder %s105, %s119
      %p121 = scmp.eq.s32.totalorder %s32, 0
      %p122 = por %p120, %p121
      %s124 = sadd.s32 %s123, 1
      %p127 = scmp.eq.s32.totalorder %s26, 1
      %p128 = scmp.ne.s32.totalorder %s123, %s125
      %p129 = scmp.eq.s32.totalorder %s26, 0
      %p130 = por %p128, %p129
      %p131 = scmp.ne.s32.totalorder %s123, %s125
      %p132 = scmp.eq.s32.totalorder %s31, 1
      %p133 = por %p131, %p132
      %p134 = scmp.ne.s32.totalorder %s125, %s126
      %p135 = scmp.eq.s32.totalorder %s31, 0
      %p136 = por %p134, %p135
      %p137 = scmp.ne.s32.totalorder %s125, %s126
      %p138 = scmp.eq.s32.totalorder %s32, 1
      %p139 = por %p137, %p138
      %p141 = scmp.ne.s32.totalorder %s126, %s140
      %p142 = scmp.eq.s32.totalorder %s32, 0
      %p143 = por %p141, %p142
      %s145 = sadd.s32 %s144, 1
      %p148 = scmp.eq.s32.totalorder %s26, 1
      %p149 = scmp.ne.s32.totalorder %s144, %s146
      %p150 = scmp.eq.s32.totalorder %s26, 0
      %p151 = por %p149, %p150
      %p152 = scmp.ne.s32.totalorder %s144, %s146
      %p153 = scmp.eq.s32.totalorder %s31, 1
      %p154 = por %p152, %p153
      %p155 = scmp.ne.s32.totalorder %s146, %s147
      %p156 = scmp.eq.s32.totalorder %s31, 0
      %p157 = por %p155, %p156
      %p158 = scmp.ne.s32.totalorder %s146, %s147
      %p159 = scmp.eq.s32.totalorder %s32, 1
      %p160 = por %p158, %p159
      %p162 = scmp.ne.s32.totalorder %s147, %s161
      %p163 = scmp.eq.s32.totalorder %s32, 0
      %p164 = por %p162, %p163
      %s166 = sadd.s32 %s165, 1
      %p169 = scmp.eq.s32.totalorder %s26, 1
      %p170 = scmp.ne.s32.totalorder %s165, %s167
      %p171 = scmp.eq.s32.totalorder %s26, 0
      %p172 = por %p170, %p171
      %p173 = scmp.ne.s32.totalorder %s165, %s167
      %p174 = scmp.eq.s32.totalorder %s31, 1
      %p175 = por %p173, %p174
      %p176 = scmp.ne.s32.totalorder %s167, %s168
      %p177 = scmp.eq.s32.totalorder %s31, 0
      %p178 = por %p176, %p177
      %p179 = scmp.ne.s32.totalorder %s167, %s168
      %p180 = scmp.eq.s32.totalorder %s32, 1
      %p181 = por %p179, %p180
      %p183 = scmp.ne.s32.totalorder %s168, %s182
      %p184 = scmp.eq.s32.totalorder %s32, 0
      %p185 = por %p183, %p184
      %s187 = sadd.s32 %s186, 1
      %p190 = scmp.eq.s32.totalorder %s26, 1
      %p191 = scmp.ne.s32.totalorder %s186, %s188
      %p192 = scmp.eq.s32.totalorder %s26, 0
      %p193 = por %p191, %p192
      %p194 = scmp.ne.s32.totalorder %s186, %s188
      %p195 = scmp.eq.s32.totalorder %s31, 1
      %p196 = por %p194, %p195
      %p197 = scmp.ne.s32.totalorder %s188, %s189
      %p198 = scmp.eq.s32.totalorder %s31, 0
      %p199 = por %p197, %p198
      %p200 = scmp.ne.s32.totalorder %s188, %s189
      %p201 = scmp.eq.s32.totalorder %s32, 1
      %p202 = por %p200, %p201
      %p204 = scmp.ne.s32.totalorder %s189, %s203
      %p205 = scmp.eq.s32.totalorder %s32, 0
      %p206 = por %p204, %p205
      %s208 = sadd.s32 %s207, 1
      %p211 = scmp.eq.s32.totalorder %s26, 1
      %p212 = scmp.ne.s32.totalorder %s207, %s209
      %p213 = scmp.eq.s32.totalorder %s26, 0
      %p214 = por %p212, %p213
      %p215 = scmp.ne.s32.totalorder %s207, %s209
      %p216 = scmp.eq.s32.totalorder %s31, 1
      %p217 = por %p215, %p216
      %p218 = scmp.ne.s32.totalorder %s209, %s210
      %p219 = scmp.eq.s32.totalorder %s31, 0
      %p220 = por %p218, %p219
      %p221 = scmp.ne.s32.totalorder %s209, %s210
      %p222 = scmp.eq.s32.totalorder %s32, 1
      %p223 = por %p221, %p222
      %p225 = scmp.ne.s32.totalorder %s210, %s224
      %p226 = scmp.eq.s32.totalorder %s32, 0
      %p227 = por %p225, %p226
      %s229 = sadd.s32 %s228, 1
      %p232 = scmp.eq.s32.totalorder %s26, 1
      %p233 = scmp.ne.s32.totalorder %s228, %s230
      %p234 = scmp.eq.s32.totalorder %s26, 0
      %p235 = por %p233, %p234
      %p236 = scmp.ne.s32.totalorder %s228, %s230
      %p237 = scmp.eq.s32.totalorder %s31, 1
      %p238 = por %p236, %p237
      %p239 = scmp.ne.s32.totalorder %s230, %s231
      %p240 = scmp.eq.s32.totalorder %s31, 0
      %p241 = por %p239, %p240
      %p242 = scmp.ne.s32.totalorder %s230, %s231
      %p243 = scmp.eq.s32.totalorder %s32, 1
      %p244 = por %p242, %p243
      %p246 = scmp.ne.s32.totalorder %s231, %s245
      %p247 = scmp.eq.s32.totalorder %s32, 0
      %p248 = por %p246, %p247
      %s250 = sadd.s32 %s249, 1
      %p253 = scmp.eq.s32.totalorder %s26, 1
      %p254 = scmp.ne.s32.totalorder %s249, %s251
      %p255 = scmp.eq.s32.totalorder %s26, 0
      %p256 = por %p254, %p255
      %p257 = scmp.ne.s32.totalorder %s249, %s251
      %p258 = scmp.eq.s32.totalorder %s31, 1
      %p259 = por %p257, %p258
      %p260 = scmp.ne.s32.totalorder %s251, %s252
      %p261 = scmp.eq.s32.totalorder %s31, 0
      %p262 = por %p260, %p261
      %p263 = scmp.ne.s32.totalorder %s251, %s252
      %p264 = scmp.eq.s32.totalorder %s32, 1
      %p265 = por %p263, %p264
      %p267 = scmp.ne.s32.totalorder %s252, %s266
      %p268 = scmp.eq.s32.totalorder %s32, 0
      %p269 = por %p267, %p268
      %s270 = ssub.s32 %s26, %s33
      %p271 = scmp.eq.s32.totalorder %s270, 0
      %s273 = sadd.s32 %s272, 1
      %s274 = scalar_select %p271, %s272, %s273
      %p277 = pneg %p271
      %p278 = scmp.eq.s32.totalorder %s26, 1
      %p279 = por %p277, %p278
      %p280 = scmp.ne.s32.totalorder %s272, %s275
      %p281 = scmp.eq.s32.totalorder %s26, 0
      %p282 = por %p280, %p281
      %p283 = scmp.ne.s32.totalorder %s272, %s275
      %p284 = scmp.eq.s32.totalorder %s31, 1
      %p285 = por %p283, %p284
      %p286 = scmp.ne.s32.totalorder %s275, %s276
      %p287 = scmp.eq.s32.totalorder %s31, 0
      %p288 = por %p286, %p287
      %p289 = scmp.ne.s32.totalorder %s275, %s276
      %p290 = scmp.eq.s32.totalorder %s32, 1
      %p291 = por %p289, %p290
      %p293 = scmp.ne.s32.totalorder %s276, %s292
      %p294 = scmp.eq.s32.totalorder %s32, 0
      %p295 = por %p293, %p294
      %p296 = scmp.le.s32.totalorder 1, %s26
      %p297 = scmp.lt.s32.totalorder %s26, 3
      %p298 = pnand %p296, %p297
      %p299 = pneg %p298
      // Predicated region
      $region9: #{tpu_custom_call.1} parent=5 // pred_check
        _
      $region10: #{tpu_custom_call.1} parent=5 // pred_check_branch
        %301 = sbr.rel (%p298) target = $region12
      $region11: #{tpu_custom_call.1} parent=5 // pred_region
        %s302 = ssub.s32 %s26, 1
        // Predicated region
        $region13: #{tpu_custom_call.1} parent=11 // pred_check
          %p303 = pneg %p73
        $region14: #{tpu_custom_call.1} parent=11 // pred_check_branch
          %305 = sbr.rel (%p303) target = $region16
        $region15: #{tpu_custom_call.1} parent=11 // pred_region
          %s307 = ssub.s32 12544, 12544
          %308 = vsyncadd [#allocation6], %s307
          %s309 = sshll.u32 [#allocation5], 4
          %s310 = int_to_ptr.vmem [resolvable:$true] %s309
          %315 = dma.hbm_to_vmem [thread:$0]  %s1, 12544, %s310, [#allocation6], 128, 128, 8
        $region16: #{tpu_custom_call.1} parent=11 // pred_fallthru
          _
        // Predicated region
        $region17: #{tpu_custom_call.1} parent=11 // pred_check
          %p316 = pneg %p94
        $region18: #{tpu_custom_call.1} parent=11 // pred_check_branch
          %318 = sbr.rel (%p316) target = $region20
        $region19: #{tpu_custom_call.1} parent=11 // pred_region
          _
        $region20: #{tpu_custom_call.1} parent=11 // pred_fallthru
          _
        // Predicated region
        $region21: #{tpu_custom_call.1} parent=11 // pred_check
          %p319 = pneg %p115
        $region22: #{tpu_custom_call.1} parent=11 // pred_check_branch
          %321 = sbr.rel (%p319) target = $region24
        $region23: #{tpu_custom_call.1} parent=11 // pred_region
          %s323 = ssub.s32 2048, 2048
          %324 = vsyncadd [#allocation6], %s323
          %s325 = sshll.u32 [#allocation7], 4
          %s326 = int_to_ptr.vmem [resolvable:$true] %s325
          %331 = dma.hbm_to_vmem [thread:$0]  %s3, 2048, %s326, [#allocation6], 64, 64, 4
        $region24: #{tpu_custom_call.1} parent=11 // pred_fallthru
          _
        // Predicated region
        $region25: #{tpu_custom_call.1} parent=11 // pred_check
          %p332 = pneg %p136
        $region26: #{tpu_custom_call.1} parent=11 // pred_check_branch
          %334 = sbr.rel (%p332) target = $region28
        $region27: #{tpu_custom_call.1} parent=11 // pred_region
          _
        $region28: #{tpu_custom_call.1} parent=11 // pred_fallthru
          _
        // Predicated region
        $region29: #{tpu_custom_call.1} parent=11 // pred_check
          %p335 = pneg %p157
        $region30: #{tpu_custom_call.1} parent=11 // pred_check_branch
          %337 = sbr.rel (%p335) target = $region32
        $region31: #{tpu_custom_call.1} parent=11 // pred_region
          %s339 = ssub.s32 1024, 1024
          %340 = vsyncadd [#allocation9], %s339
          %s341 = sshll.u32 [#allocation8], 4
          %s342 = int_to_ptr.vmem [resolvable:$true] %s341
          %347 = dma.hbm_to_vmem [thread:$0]  %s5, 1024, %s342, [#allocation9], 64, 64, 4
        $region32: #{tpu_custom_call.1} parent=11 // pred_fallthru
          _
        // Predicated region
        $region33: #{tpu_custom_call.1} parent=11 // pred_check
          %p348 = pneg %p178
        $region34: #{tpu_custom_call.1} parent=11 // pred_check_branch
          %350 = sbr.rel (%p348) target = $region36
        $region35: #{tpu_custom_call.1} parent=11 // pred_region
          _
        $region36: #{tpu_custom_call.1} parent=11 // pred_fallthru
          _
        // Predicated region
        $region37: #{tpu_custom_call.1} parent=11 // pred_check
          %p351 = pneg %p199
        $region38: #{tpu_custom_call.1} parent=11 // pred_check_branch
          %353 = sbr.rel (%p351) target = $region40
        $region39: #{tpu_custom_call.1} parent=11 // pred_region
          %s355 = ssub.s32 1024, 1024
          %356 = vsyncadd [#allocation9], %s355
          %s357 = sshll.u32 [#allocation10], 4
          %s358 = int_to_ptr.vmem [resolvable:$true] %s357
          %363 = dma.hbm_to_vmem [thread:$0]  %s7, 1024, %s358, [#allocation9], 64, 64, 4
        $region40: #{tpu_custom_call.1} parent=11 // pred_fallthru
          _
        // Predicated region
        $region41: #{tpu_custom_call.1} parent=11 // pred_check
          %p364 = pneg %p220
        $region42: #{tpu_custom_call.1} parent=11 // pred_check_branch
          %366 = sbr.rel (%p364) target = $region44
        $region43: #{tpu_custom_call.1} parent=11 // pred_region
          _
        $region44: #{tpu_custom_call.1} parent=11 // pred_fallthru
          _
        // Predicated region
        $region45: #{tpu_custom_call.1} parent=11 // pred_check
          %p367 = pneg %p241
        $region46: #{tpu_custom_call.1} parent=11 // pred_check_branch
          %369 = sbr.rel (%p367) target = $region48
        $region47: #{tpu_custom_call.1} parent=11 // pred_region
          %s371 = ssub.s32 1024, 1024
          %372 = vsyncadd [#allocation12], %s371
          %s373 = sshll.u32 [#allocation11], 4
          %s374 = int_to_ptr.vmem [resolvable:$true] %s373
          %379 = dma.hbm_to_vmem [thread:$0]  %s9, 1024, %s374, [#allocation12], 64, 64, 4
        $region48: #{tpu_custom_call.1} parent=11 // pred_fallthru
          _
        // Predicated region
        $region49: #{tpu_custom_call.1} parent=11 // pred_check
          %p380 = pneg %p262
        $region50: #{tpu_custom_call.1} parent=11 // pred_check_branch
          %382 = sbr.rel (%p380) target = $region52
        $region51: #{tpu_custom_call.1} parent=11 // pred_region
          _
        $region52: #{tpu_custom_call.1} parent=11 // pred_fallthru
          _
      $region12: #{tpu_custom_call.1} parent=5 // pred_fallthru
        _
      %p383 = scmp.lt.s32.totalorder %s26, 2
      // Predicated region
      $region53: #{tpu_custom_call.1} parent=5 // pred_check
        %p384 = pneg %p383
      $region54: #{tpu_custom_call.1} parent=5 // pred_check_branch
        %386 = sbr.rel (%p384) target = $region56
      $region55: #{tpu_custom_call.1} parent=5 // pred_region
        // Predicated region
        $region57: #{tpu_custom_call.1} parent=55 // pred_check
          %p387 = pneg %p46
        $region58: #{tpu_custom_call.1} parent=55 // pred_check_branch
          %389 = sbr.rel (%p387) target = $region60
        $region59: #{tpu_custom_call.1} parent=55 // pred_region
          %s390 = sand.u32 %s36, 1
          %s391 = scalar_lea.sflag [#allocation3], %s390
          %s392 = sand.u32 %s36, 1
          %s393 = smul.addr %s392, 224
          %s394 = scalar_lea.vmem [#allocation2], %s393
          %s395 = smul.u32 4, %s26
          %s397 = ssub.s32 3584, 3584
          %398 = vsyncadd %s391, %s397
          %s399 = smul.addr %s395, 7
          %s400 = smul.addr %s399, 128
          %s401 = scalar_lea.hbm %s0, %s400
          %s402 = sshll.u32 %s394, 4
          %s403 = int_to_ptr.vmem [resolvable:$true] %s402
          %408 = dma.hbm_to_vmem [thread:$0]  %s401, 3584, %s403, %s391, 896, 896, 56
        $region60: #{tpu_custom_call.1} parent=55 // pred_fallthru
          _
      $region56: #{tpu_custom_call.1} parent=5 // pred_fallthru
        _
      %p409 = scmp.le.s32.totalorder 1, %s26
      %p410 = scmp.lt.s32.totalorder %s26, 3
      %p411 = pnand %p409, %p410
      %p412 = pneg %p411
      // Predicated region
      $region61: #{tpu_custom_call.1} parent=5 // pred_check
        _
      $region62: #{tpu_custom_call.1} parent=5 // pred_check_branch
        %414 = sbr.rel (%p411) target = $region64
      $region63: #{tpu_custom_call.1} parent=5 // pred_region
        %s415 = ssub.s32 %s26, 1
        %s416 = sand.u32 %s39, 1
        %s417 = scalar_lea.sflag [#allocation3], %s416
        %s418 = sand.u32 %s39, 1
        %s419 = smul.addr %s418, 224
        %s420 = scalar_lea.vmem [#allocation2], %s419
        // Predicated region
        $region65: #{tpu_custom_call.1} parent=63 // pred_check
          %p421 = pneg %p52
        $region66: #{tpu_custom_call.1} parent=63 // pred_check_branch
          %423 = sbr.rel (%p421) target = $region68
        $region67: #{tpu_custom_call.1} parent=63 // pred_region
          %424 = dma.done %s417, 3584
        $region68: #{tpu_custom_call.1} parent=63 // pred_fallthru
          _
        // Predicated region
        $region69: #{tpu_custom_call.1} parent=63 // pred_check
          %p425 = pneg %p73
        $region70: #{tpu_custom_call.1} parent=63 // pred_check_branch
          %427 = sbr.rel (%p425) target = $region72
        $region71: #{tpu_custom_call.1} parent=63 // pred_region
          %428 = dma.done [#allocation6], 12544
        $region72: #{tpu_custom_call.1} parent=63 // pred_fallthru
          _
        // Predicated region
        $region73: #{tpu_custom_call.1} parent=63 // pred_check
          %p429 = pneg %p115
        $region74: #{tpu_custom_call.1} parent=63 // pred_check_branch
          %431 = sbr.rel (%p429) target = $region76
        $region75: #{tpu_custom_call.1} parent=63 // pred_region
          %432 = dma.done [#allocation6], 2048
        $region76: #{tpu_custom_call.1} parent=63 // pred_fallthru
          _
        // Predicated region
        $region77: #{tpu_custom_call.1} parent=63 // pred_check
          %p433 = pneg %p157
        $region78: #{tpu_custom_call.1} parent=63 // pred_check_branch
          %435 = sbr.rel (%p433) target = $region80
        $region79: #{tpu_custom_call.1} parent=63 // pred_region
          %436 = dma.done [#allocation9], 1024
        $region80: #{tpu_custom_call.1} parent=63 // pred_fallthru
          _
        // Predicated region
        $region81: #{tpu_custom_call.1} parent=63 // pred_check
          %p437 = pneg %p199
        $region82: #{tpu_custom_call.1} parent=63 // pred_check_branch
          %439 = sbr.rel (%p437) target = $region84
        $region83: #{tpu_custom_call.1} parent=63 // pred_region
          %440 = dma.done [#allocation9], 1024
        $region84: #{tpu_custom_call.1} parent=63 // pred_fallthru
          _
        // Predicated region
        $region85: #{tpu_custom_call.1} parent=63 // pred_check
          %p441 = pneg %p241
        $region86: #{tpu_custom_call.1} parent=63 // pred_check_branch
          %443 = sbr.rel (%p441) target = $region88
        $region87: #{tpu_custom_call.1} parent=63 // pred_region
          %444 = dma.done [#allocation12], 1024
        $region88: #{tpu_custom_call.1} parent=63 // pred_fallthru
          _
        %s445 = sand.u32 %s39, 1
        %s446 = scalar_lea.sflag [#allocation3], %s445
        %s447 = sand.u32 %s39, 1
        %s448 = smul.addr %s447, 224
        %s449 = scalar_lea.vmem [#allocation2], %s448
        %p450 = pneg %p52
        %p451 = pneg %p49
        %p452 = pneg %p73
        %p453 = pneg %p70
        %p454 = pneg %p94
        %p455 = pneg %p91
        %p456 = pneg %p115
        %p457 = pneg %p112
        %p458 = pneg %p136
        %p459 = pneg %p133
        %p460 = pneg %p157
        %p461 = pneg %p154
        %p462 = pneg %p178
        %p463 = pneg %p175
        %p464 = pneg %p199
        %p465 = pneg %p196
        %p466 = pneg %p220
        %p467 = pneg %p217
        %p468 = pneg %p241
        %p469 = pneg %p238
        %p470 = pneg %p262
        %p471 = pneg %p259
        %p472 = pneg %p288
        %p473 = pneg %p285
        %s474 = sand.u32 %s275, 1
        %s475 = scalar_lea.sflag [#allocation4], %s474
        %s476 = sand.u32 %s275, 1
        %s477 = smul.addr %s476, 32
        %s478 = scalar_lea.vmem [#allocation13], %s477
        %s479 = smul.u32 4, %s31
        %s480 = smul.u32 4, %s31
        %v482 = vld [vmem:[%s420] sm:$0xff]
        %v483 = vld [vmem:[%s420 + $0x8] sm:$0xff]
        %v484 = vld [vmem:[%s420 + $0x10] sm:$0xff]
        %v485 = vld [vmem:[%s420 + $0x18] sm:$0xff]
        %v486 = vld [vmem:[%s420 + $0x20] sm:$0xff]
        %v487 = vld [vmem:[%s420 + $0x28] sm:$0xff]
        %v488 = vld [vmem:[%s420 + $0x30] sm:$0xff]
        %v489 = vld [vmem:[%s420 + $0x38] sm:$0xff]
        %v490 = vld [vmem:[%s420 + $0x40] sm:$0xff]
        %v491 = vld [vmem:[%s420 + $0x48] sm:$0xff]
        %v492 = vld [vmem:[%s420 + $0x50] sm:$0xff]
        %v493 = vld [vmem:[%s420 + $0x58] sm:$0xff]
        %v494 = vld [vmem:[%s420 + $0x60] sm:$0xff]
        %v495 = vld [vmem:[%s420 + $0x68] sm:$0xff]
        %v496 = vld [vmem:[%s420 + $0x70] sm:$0xff]
        %v497 = vld [vmem:[%s420 + $0x78] sm:$0xff]
        %v498 = vld [vmem:[%s420 + $0x80] sm:$0xff]
        %v499 = vld [vmem:[%s420 + $0x88] sm:$0xff]
        %v500 = vld [vmem:[%s420 + $0x90] sm:$0xff]
        %v501 = vld [vmem:[%s420 + $0x98] sm:$0xff]
        %v502 = vld [vmem:[%s420 + $0xa0] sm:$0xff]
        %v503 = vld [vmem:[%s420 + $0xa8] sm:$0xff]
        %v504 = vld [vmem:[%s420 + $0xb0] sm:$0xff]
        %v505 = vld [vmem:[%s420 + $0xb8] sm:$0xff]
        %v506 = vld [vmem:[%s420 + $0xc0] sm:$0xff]
        %v507 = vld [vmem:[%s420 + $0xc8] sm:$0xff]
        %v508 = vld [vmem:[%s420 + $0xd0] sm:$0xff]
        %v509 = vld [vmem:[%s420 + $0xd8] sm:$0xff]
        %v510 = vpack.c.bf16 %v489, %v482
        %v511 = vpack.c.bf16 %v490, %v483
        %v512 = vpack.c.bf16 %v491, %v484
        %v513 = vpack.c.bf16 %v492, %v485
        %v514 = vpack.c.bf16 %v493, %v486
        %v515 = vpack.c.bf16 %v494, %v487
        %v516 = vpack.c.bf16 %v495, %v488
        %v517 = vpack.c.bf16 %v503, %v496
        %v518 = vpack.c.bf16 %v504, %v497
        %v519 = vpack.c.bf16 %v505, %v498
        %v520 = vpack.c.bf16 %v506, %v499
        %v521 = vpack.c.bf16 %v507, %v500
        %v522 = vpack.c.bf16 %v508, %v501
        %v523 = vpack.c.bf16 %v509, %v502
        %v524 = vld [vmem:[#allocation5] sm:$0xff]
        %v525 = vld [vmem:[#allocation5 + $0x8] sm:$0xff]
        %v526 = vld [vmem:[#allocation5 + $0x10] sm:$0xff]
        %v527 = vld [vmem:[#allocation5 + $0x18] sm:$0xff]
        %v528 = vld [vmem:[#allocation5 + $0x20] sm:$0xff]
        %v529 = vld [vmem:[#allocation5 + $0x28] sm:$0xff]
        %v530 = vld [vmem:[#allocation5 + $0x30] sm:$0xff]
        %v531 = vld [vmem:[#allocation5 + $0x38] sm:$0xff]
        %v532 = vld [vmem:[#allocation5 + $0x40] sm:$0xff]
        %v533 = vld [vmem:[#allocation5 + $0x48] sm:$0xff]
        %v534 = vld [vmem:[#allocation5 + $0x50] sm:$0xff]
        %v535 = vld [vmem:[#allocation5 + $0x58] sm:$0xff]
        %v536 = vld [vmem:[#allocation5 + $0x60] sm:$0xff]
        %v537 = vld [vmem:[#allocation5 + $0x68] sm:$0xff]
        %v538 = vld [vmem:[#allocation5 + $0x70] sm:$0xff]
        %v539 = vld [vmem:[#allocation5 + $0x78] sm:$0xff]
        %v540 = vld [vmem:[#allocation5 + $0x80] sm:$0xff]
        %v541 = vld [vmem:[#allocation5 + $0x88] sm:$0xff]
        %v542 = vld [vmem:[#allocation5 + $0x90] sm:$0xff]
        %v543 = vld [vmem:[#allocation5 + $0x98] sm:$0xff]
        %v544 = vld [vmem:[#allocation5 + $0xa0] sm:$0xff]
        %v545 = vld [vmem:[#allocation5 + $0xa8] sm:$0xff]
        %v546 = vld [vmem:[#allocation5 + $0xb0] sm:$0xff]
        %v547 = vld [vmem:[#allocation5 + $0xb8] sm:$0xff]
        %v548 = vld [vmem:[#allocation5 + $0xc0] sm:$0xff]
        %v549 = vld [vmem:[#allocation5 + $0xc8] sm:$0xff]
        %v550 = vld [vmem:[#allocation5 + $0xd0] sm:$0xff]
        %v551 = vld [vmem:[#allocation5 + $0xd8] sm:$0xff]
        %v552 = vld [vmem:[#allocation5 + $0xe0] sm:$0xff]
        %v553 = vld [vmem:[#allocation5 + $0xe8] sm:$0xff]
        %v554 = vld [vmem:[#allocation5 + $0xf0] sm:$0xff]
        %v555 = vld [vmem:[#allocation5 + $0xf8] sm:$0xff]
        %v556 = vld [vmem:[#allocation5 + $0x100] sm:$0xff]
        %v557 = vld [vmem:[#allocation5 + $0x108] sm:$0xff]
        %v558 = vld [vmem:[#allocation5 + $0x110] sm:$0xff]
        %v559 = vld [vmem:[#allocation5 + $0x118] sm:$0xff]
        %v560 = vld [vmem:[#allocation5 + $0x120] sm:$0xff]
        %v561 = vld [vmem:[#allocation5 + $0x128] sm:$0xff]
        %v562 = vld [vmem:[#allocation5 + $0x130] sm:$0xff]
        %v563 = vld [vmem:[#allocation5 + $0x138] sm:$0xff]
        %v564 = vld [vmem:[#allocation5 + $0x140] sm:$0xff]
        %v565 = vld [vmem:[#allocation5 + $0x148] sm:$0xff]
        %v566 = vld [vmem:[#allocation5 + $0x150] sm:$0xff]
        %v567 = vld [vmem:[#allocation5 + $0x158] sm:$0xff]
        %v568 = vld [vmem:[#allocation5 + $0x160] sm:$0xff]
        %v569 = vld [vmem:[#allocation5 + $0x168] sm:$0xff]
        %v570 = vld [vmem:[#allocation5 + $0x170] sm:$0xff]
        %v571 = vld [vmem:[#allocation5 + $0x178] sm:$0xff]
        %v572 = vld [vmem:[#allocation5 + $0x180] sm:$0xff]
        %v573 = vld [vmem:[#allocation5 + $0x188] sm:$0xff]
        %v574 = vld [vmem:[#allocation5 + $0x190] sm:$0xff]
        %v575 = vld [vmem:[#allocation5 + $0x198] sm:$0xff]
        %v576 = vld [vmem:[#allocation5 + $0x1a0] sm:$0xff]
        %v577 = vld [vmem:[#allocation5 + $0x1a8] sm:$0xff]
        %v578 = vld [vmem:[#allocation5 + $0x1b0] sm:$0xff]
        %v579 = vld [vmem:[#allocation5 + $0x1b8] sm:$0xff]
        %v580 = vld [vmem:[#allocation5 + $0x1c0] sm:$0xff]
        %v581 = vld [vmem:[#allocation5 + $0x1c8] sm:$0xff]
        %v582 = vld [vmem:[#allocation5 + $0x1d0] sm:$0xff]
        %v583 = vld [vmem:[#allocation5 + $0x1d8] sm:$0xff]
        %v584 = vld [vmem:[#allocation5 + $0x1e0] sm:$0xff]
        %v585 = vld [vmem:[#allocation5 + $0x1e8] sm:$0xff]
        %v586 = vld [vmem:[#allocation5 + $0x1f0] sm:$0xff]
        %v587 = vld [vmem:[#allocation5 + $0x1f8] sm:$0xff]
        %v588 = vld [vmem:[#allocation5 + $0x200] sm:$0xff]
        %v589 = vld [vmem:[#allocation5 + $0x208] sm:$0xff]
        %v590 = vld [vmem:[#allocation5 + $0x210] sm:$0xff]
        %v591 = vld [vmem:[#allocation5 + $0x218] sm:$0xff]
        %v592 = vld [vmem:[#allocation5 + $0x220] sm:$0xff]
        %v593 = vld [vmem:[#allocation5 + $0x228] sm:$0xff]
        %v594 = vld [vmem:[#allocation5 + $0x230] sm:$0xff]
        %v595 = vld [vmem:[#allocation5 + $0x238] sm:$0xff]
        %v596 = vld [vmem:[#allocation5 + $0x240] sm:$0xff]
        %v597 = vld [vmem:[#allocation5 + $0x248] sm:$0xff]
        %v598 = vld [vmem:[#allocation5 + $0x250] sm:$0xff]
        %v599 = vld [vmem:[#allocation5 + $0x258] sm:$0xff]
        %v600 = vld [vmem:[#allocation5 + $0x260] sm:$0xff]
        %v601 = vld [vmem:[#allocation5 + $0x268] sm:$0xff]
        %v602 = vld [vmem:[#allocation5 + $0x270] sm:$0xff]
        %v603 = vld [vmem:[#allocation5 + $0x278] sm:$0xff]
        %v604 = vld [vmem:[#allocation5 + $0x280] sm:$0xff]
        %v605 = vld [vmem:[#allocation5 + $0x288] sm:$0xff]
        %v606 = vld [vmem:[#allocation5 + $0x290] sm:$0xff]
        %v607 = vld [vmem:[#allocation5 + $0x298] sm:$0xff]
        %v608 = vld [vmem:[#allocation5 + $0x2a0] sm:$0xff]
        %v609 = vld [vmem:[#allocation5 + $0x2a8] sm:$0xff]
        %v610 = vld [vmem:[#allocation5 + $0x2b0] sm:$0xff]
        %v611 = vld [vmem:[#allocation5 + $0x2b8] sm:$0xff]
        %v612 = vld [vmem:[#allocation5 + $0x2c0] sm:$0xff]
        %v613 = vld [vmem:[#allocation5 + $0x2c8] sm:$0xff]
        %v614 = vld [vmem:[#allocation5 + $0x2d0] sm:$0xff]
        %v615 = vld [vmem:[#allocation5 + $0x2d8] sm:$0xff]
        %v616 = vld [vmem:[#allocation5 + $0x2e0] sm:$0xff]
        %v617 = vld [vmem:[#allocation5 + $0x2e8] sm:$0xff]
        %v618 = vld [vmem:[#allocation5 + $0x2f0] sm:$0xff]
        %v619 = vld [vmem:[#allocation5 + $0x2f8] sm:$0xff]
        %v620 = vld [vmem:[#allocation5 + $0x300] sm:$0xff]
        %v621 = vld [vmem:[#allocation5 + $0x308] sm:$0xff]
        %v622 = vld [vmem:[%s2] sm:$0x3]
        %v624 = vlaneseq
        %v625 = vshrl.u32 %v624, 7
        %v626 = vsub.s32 0, %v625
        %v627 = vrot.slane %v622, %v626
        %v628 = vlaneseq
        %v629 = vshrl.u32 %v628, 7
        %v630 = vsub.s32 1, %v629
        %v631 = vrot.slane %v622, %v630
        %v732 = vunpack.c.l.b16 %v524
        %v733 = vunpack.c.h.b16 %v524
        %v734 = vunpack.c.l.b16 %v525
        %v735 = vunpack.c.h.b16 %v525
        %v736 = vunpack.c.l.b16 %v526
        %v737 = vunpack.c.h.b16 %v526
        %v738 = vunpack.c.l.b16 %v527
        %v739 = vunpack.c.h.b16 %v527
        %v740 = vunpack.c.l.b16 %v528
        %v741 = vunpack.c.h.b16 %v528
        %v742 = vunpack.c.l.b16 %v529
        %v743 = vunpack.c.h.b16 %v529
        %v744 = vunpack.c.l.b16 %v530
        %v745 = vunpack.c.h.b16 %v530
        %v746 = vunpack.c.l.b16 %v531
        %v747 = vunpack.c.h.b16 %v531
        %v748 = vunpack.c.l.b16 %v532
        %v749 = vunpack.c.h.b16 %v532
        %v750 = vunpack.c.l.b16 %v533
        %v751 = vunpack.c.h.b16 %v533
        %v752 = vunpack.c.l.b16 %v534
        %v753 = vunpack.c.h.b16 %v534
        %v754 = vunpack.c.l.b16 %v535
        %v755 = vunpack.c.h.b16 %v535
        %v756 = vunpack.c.l.b16 %v536
        %v757 = vunpack.c.h.b16 %v536
        %v758 = vunpack.c.l.b16 %v537
        %v759 = vunpack.c.h.b16 %v537
        %v760 = vunpack.c.l.b16 %v538
        %v761 = vunpack.c.h.b16 %v538
        %v762 = vunpack.c.l.b16 %v539
        %v763 = vunpack.c.h.b16 %v539
        %v764 = vunpack.c.l.b16 %v540
        %v765 = vunpack.c.h.b16 %v540
        %v766 = vunpack.c.l.b16 %v541
        %v767 = vunpack.c.h.b16 %v541
        %v768 = vunpack.c.l.b16 %v542
        %v769 = vunpack.c.h.b16 %v542
        %v770 = vunpack.c.l.b16 %v543
        %v771 = vunpack.c.h.b16 %v543
        %v772 = vunpack.c.l.b16 %v544
        %v773 = vunpack.c.h.b16 %v544
        %v774 = vunpack.c.l.b16 %v545
        %v775 = vunpack.c.h.b16 %v545
        %v776 = vunpack.c.l.b16 %v546
        %v777 = vunpack.c.h.b16 %v546
        %v778 = vunpack.c.l.b16 %v547
        %v779 = vunpack.c.h.b16 %v547
        %v780 = vunpack.c.l.b16 %v548
        %v781 = vunpack.c.h.b16 %v548
        %v782 = vunpack.c.l.b16 %v549
        %v783 = vunpack.c.h.b16 %v549
        %v784 = vunpack.c.l.b16 %v550
        %v785 = vunpack.c.h.b16 %v550
        %v786 = vunpack.c.l.b16 %v551
        %v787 = vunpack.c.h.b16 %v551
        %v788 = vunpack.c.l.b16 %v552
        %v789 = vunpack.c.h.b16 %v552
        %v790 = vunpack.c.l.b16 %v553
        %v791 = vunpack.c.h.b16 %v553
        %v792 = vunpack.c.l.b16 %v554
        %v793 = vunpack.c.h.b16 %v554
        %v794 = vunpack.c.l.b16 %v555
        %v795 = vunpack.c.h.b16 %v555
        %v796 = vunpack.c.l.b16 %v556
        %v797 = vunpack.c.h.b16 %v556
        %v798 = vunpack.c.l.b16 %v557
        %v799 = vunpack.c.h.b16 %v557
        %v800 = vunpack.c.l.b16 %v558
        %v801 = vunpack.c.h.b16 %v558
        %v802 = vunpack.c.l.b16 %v559
        %v803 = vunpack.c.h.b16 %v559
        %v804 = vunpack.c.l.b16 %v560
        %v805 = vunpack.c.h.b16 %v560
        %v806 = vunpack.c.l.b16 %v561
        %v807 = vunpack.c.h.b16 %v561
        %v808 = vunpack.c.l.b16 %v562
        %v809 = vunpack.c.h.b16 %v562
        %v810 = vunpack.c.l.b16 %v563
        %v811 = vunpack.c.h.b16 %v563
        %v812 = vunpack.c.l.b16 %v564
        %v813 = vunpack.c.h.b16 %v564
        %v814 = vunpack.c.l.b16 %v565
        %v815 = vunpack.c.h.b16 %v565
        %v816 = vunpack.c.l.b16 %v566
        %v817 = vunpack.c.h.b16 %v566
        %v818 = vunpack.c.l.b16 %v567
        %v819 = vunpack.c.h.b16 %v567
        %v820 = vunpack.c.l.b16 %v568
        %v821 = vunpack.c.h.b16 %v568
        %v822 = vunpack.c.l.b16 %v569
        %v823 = vunpack.c.h.b16 %v569
        %v824 = vunpack.c.l.b16 %v570
        %v825 = vunpack.c.h.b16 %v570
        %v826 = vunpack.c.l.b16 %v571
        %v827 = vunpack.c.h.b16 %v571
        %v828 = vunpack.c.l.b16 %v572
        %v829 = vunpack.c.h.b16 %v572
        %v830 = vunpack.c.l.b16 %v573
        %v831 = vunpack.c.h.b16 %v573
        %v832 = vunpack.c.l.b16 %v574
        %v833 = vunpack.c.h.b16 %v574
        %v834 = vunpack.c.l.b16 %v575
        %v835 = vunpack.c.h.b16 %v575
        %v836 = vunpack.c.l.b16 %v576
        %v837 = vunpack.c.h.b16 %v576
        %v838 = vunpack.c.l.b16 %v577
        %v839 = vunpack.c.h.b16 %v577
        %v840 = vunpack.c.l.b16 %v578
        %v841 = vunpack.c.h.b16 %v578
        %v842 = vunpack.c.l.b16 %v579
        %v843 = vunpack.c.h.b16 %v579
        %v844 = vunpack.c.l.b16 %v580
        %v845 = vunpack.c.h.b16 %v580
        %v846 = vunpack.c.l.b16 %v581
        %v847 = vunpack.c.h.b16 %v581
        %v848 = vunpack.c.l.b16 %v582
        %v849 = vunpack.c.h.b16 %v582
        %v850 = vunpack.c.l.b16 %v583
        %v851 = vunpack.c.h.b16 %v583
        %v852 = vunpack.c.l.b16 %v584
        %v853 = vunpack.c.h.b16 %v584
        %v854 = vunpack.c.l.b16 %v585
        %v855 = vunpack.c.h.b16 %v585
        %v856 = vunpack.c.l.b16 %v586
        %v857 = vunpack.c.h.b16 %v586
        %v858 = vunpack.c.l.b16 %v587
        %v859 = vunpack.c.h.b16 %v587
        %v860 = vunpack.c.l.b16 %v588
        %v861 = vunpack.c.h.b16 %v588
        %v862 = vunpack.c.l.b16 %v589
        %v863 = vunpack.c.h.b16 %v589
        %v864 = vunpack.c.l.b16 %v590
        %v865 = vunpack.c.h.b16 %v590
        %v866 = vunpack.c.l.b16 %v591
        %v867 = vunpack.c.h.b16 %v591
        %v868 = vunpack.c.l.b16 %v592
        %v869 = vunpack.c.h.b16 %v592
        %v870 = vunpack.c.l.b16 %v593
        %v871 = vunpack.c.h.b16 %v593
        %v872 = vunpack.c.l.b16 %v594
        %v873 = vunpack.c.h.b16 %v594
        %v874 = vunpack.c.l.b16 %v595
        %v875 = vunpack.c.h.b16 %v595
        %v876 = vunpack.c.l.b16 %v596
        %v877 = vunpack.c.h.b16 %v596
        %v878 = vunpack.c.l.b16 %v597
        %v879 = vunpack.c.h.b16 %v597
        %v880 = vunpack.c.l.b16 %v598
        %v881 = vunpack.c.h.b16 %v598
        %v882 = vunpack.c.l.b16 %v599
        %v883 = vunpack.c.h.b16 %v599
        %v884 = vunpack.c.l.b16 %v600
        %v885 = vunpack.c.h.b16 %v600
        %v886 = vunpack.c.l.b16 %v601
        %v887 = vunpack.c.h.b16 %v601
        %v888 = vunpack.c.l.b16 %v602
        %v889 = vunpack.c.h.b16 %v602
        %v890 = vunpack.c.l.b16 %v603
        %v891 = vunpack.c.h.b16 %v603
        %v892 = vunpack.c.l.b16 %v604
        %v893 = vunpack.c.h.b16 %v604
        %v894 = vunpack.c.l.b16 %v605
        %v895 = vunpack.c.h.b16 %v605
        %v896 = vunpack.c.l.b16 %v606
        %v897 = vunpack.c.h.b16 %v606
        %v898 = vunpack.c.l.b16 %v607
        %v899 = vunpack.c.h.b16 %v607
        %v900 = vunpack.c.l.b16 %v608
        %v901 = vunpack.c.h.b16 %v608
        %v902 = vunpack.c.l.b16 %v609
        %v903 = vunpack.c.h.b16 %v609
        %v904 = vunpack.c.l.b16 %v610
        %v905 = vunpack.c.h.b16 %v610
        %v906 = vunpack.c.l.b16 %v611
        %v907 = vunpack.c.h.b16 %v611
        %v908 = vunpack.c.l.b16 %v612
        %v909 = vunpack.c.h.b16 %v612
        %v910 = vunpack.c.l.b16 %v613
        %v911 = vunpack.c.h.b16 %v613
        %v912 = vunpack.c.l.b16 %v614
        %v913 = vunpack.c.h.b16 %v614
        %v914 = vunpack.c.l.b16 %v615
        %v915 = vunpack.c.h.b16 %v615
        %v916 = vunpack.c.l.b16 %v616
        %v917 = vunpack.c.h.b16 %v616
        %v918 = vunpack.c.l.b16 %v617
        %v919 = vunpack.c.h.b16 %v617
        %v920 = vunpack.c.l.b16 %v618
        %v921 = vunpack.c.h.b16 %v618
        %v922 = vunpack.c.l.b16 %v619
        %v923 = vunpack.c.h.b16 %v619
        %v924 = vunpack.c.l.b16 %v620
        %v925 = vunpack.c.h.b16 %v620
        %v926 = vunpack.c.l.b16 %v621
        %v927 = vunpack.c.h.b16 %v621
        %v928 = vpack.c.b16 %v734, %v732
        %v929 = vpack.c.b16 %v735, %v733
        %v930 = vpack.c.b16 %v738, %v736
        %v931 = vpack.c.b16 %v739, %v737
        %v932 = vpack.c.b16 %v742, %v740
        %v933 = vpack.c.b16 %v743, %v741
        %v934 = vpack.c.b16 %v746, %v744
        %v935 = vpack.c.b16 %v747, %v745
        %v936 = vpack.c.b16 %v750, %v748
        %v937 = vpack.c.b16 %v751, %v749
        %v938 = vpack.c.b16 %v754, %v752
        %v939 = vpack.c.b16 %v755, %v753
        %v940 = vpack.c.b16 %v758, %v756
        %v941 = vpack.c.b16 %v759, %v757
        %v942 = vpack.c.b16 %v762, %v760
        %v943 = vpack.c.b16 %v763, %v761
        %v944 = vpack.c.b16 %v766, %v764
        %v945 = vpack.c.b16 %v767, %v765
        %v946 = vpack.c.b16 %v770, %v768
        %v947 = vpack.c.b16 %v771, %v769
        %v948 = vpack.c.b16 %v774, %v772
        %v949 = vpack.c.b16 %v775, %v773
        %v950 = vpack.c.b16 %v778, %v776
        %v951 = vpack.c.b16 %v779, %v777
        %v952 = vpack.c.b16 %v782, %v780
        %v953 = vpack.c.b16 %v783, %v781
        %v954 = vpack.c.b16 %v786, %v784
        %v955 = vpack.c.b16 %v787, %v785
        %v956 = vpack.c.b16 %v790, %v788
        %v957 = vpack.c.b16 %v791, %v789
        %v958 = vpack.c.b16 %v794, %v792
        %v959 = vpack.c.b16 %v795, %v793
        %v960 = vpack.c.b16 %v798, %v796
        %v961 = vpack.c.b16 %v799, %v797
        %v962 = vpack.c.b16 %v802, %v800
        %v963 = vpack.c.b16 %v803, %v801
        %v964 = vpack.c.b16 %v806, %v804
        %v965 = vpack.c.b16 %v807, %v805
        %v966 = vpack.c.b16 %v810, %v808
        %v967 = vpack.c.b16 %v811, %v809
        %v968 = vpack.c.b16 %v814, %v812
        %v969 = vpack.c.b16 %v815, %v813
        %v970 = vpack.c.b16 %v818, %v816
        %v971 = vpack.c.b16 %v819, %v817
        %v972 = vpack.c.b16 %v822, %v820
        %v973 = vpack.c.b16 %v823, %v821
        %v974 = vpack.c.b16 %v826, %v824
        %v975 = vpack.c.b16 %v827, %v825
        %v976 = vpack.c.b16 %v830, %v828
        %v977 = vpack.c.b16 %v831, %v829
        %v978 = vpack.c.b16 %v834, %v832
        %v979 = vpack.c.b16 %v835, %v833
        %v980 = vpack.c.b16 %v838, %v836
        %v981 = vpack.c.b16 %v839, %v837
        %v982 = vpack.c.b16 %v842, %v840
        %v983 = vpack.c.b16 %v843, %v841
        %v984 = vpack.c.b16 %v846, %v844
        %v985 = vpack.c.b16 %v847, %v845
        %v986 = vpack.c.b16 %v850, %v848
        %v987 = vpack.c.b16 %v851, %v849
        %v988 = vpack.c.b16 %v854, %v852
        %v989 = vpack.c.b16 %v855, %v853
        %v990 = vpack.c.b16 %v858, %v856
        %v991 = vpack.c.b16 %v859, %v857
        %v992 = vpack.c.b16 %v862, %v860
        %v993 = vpack.c.b16 %v863, %v861
        %v994 = vpack.c.b16 %v866, %v864
        %v995 = vpack.c.b16 %v867, %v865
        %v996 = vpack.c.b16 %v870, %v868
        %v997 = vpack.c.b16 %v871, %v869
        %v998 = vpack.c.b16 %v874, %v872
        %v999 = vpack.c.b16 %v875, %v873
        %v1000 = vpack.c.b16 %v878, %v876
        %v1001 = vpack.c.b16 %v879, %v877
        %v1002 = vpack.c.b16 %v882, %v880
        %v1003 = vpack.c.b16 %v883, %v881
        %v1004 = vpack.c.b16 %v886, %v884
        %v1005 = vpack.c.b16 %v887, %v885
        %v1006 = vpack.c.b16 %v890, %v888
        %v1007 = vpack.c.b16 %v891, %v889
        %v1008 = vpack.c.b16 %v894, %v892
        %v1009 = vpack.c.b16 %v895, %v893
        %v1010 = vpack.c.b16 %v898, %v896
        %v1011 = vpack.c.b16 %v899, %v897
        %v1012 = vpack.c.b16 %v902, %v900
        %v1013 = vpack.c.b16 %v903, %v901
        %v1014 = vpack.c.b16 %v906, %v904
        %v1015 = vpack.c.b16 %v907, %v905
        %v1016 = vpack.c.b16 %v910, %v908
        %v1017 = vpack.c.b16 %v911, %v909
        %v1018 = vpack.c.b16 %v914, %v912
        %v1019 = vpack.c.b16 %v915, %v913
        %v1020 = vpack.c.b16 %v918, %v916
        %v1021 = vpack.c.b16 %v919, %v917
        %v1022 = vpack.c.b16 %v922, %v920
        %v1023 = vpack.c.b16 %v923, %v921
        %v1024 = vpack.c.b16 %v926, %v924
        %v1025 = vpack.c.b16 %v927, %v925
        %vm1124 = vcmask 130048
        %v1126 = vsel %vm1124, %v516, 0
        %v1129 = vsel %vm1124, %v523, 0
        %1131 = vmatprep.subr.bf16.mxu0 %v943
        %1132 = vmatpush1.bf16.msra.mxu0 %v942
        %1133 = vmatprep.subr.bf16.mxu0 %v941
        %1134 = vmatpush1.bf16.msra.mxu0 %v940
        %1135 = vmatprep.subr.bf16.mxu0 %v939
        %1136 = vmatpush1.bf16.msra.mxu0 %v938
        %1137 = vmatprep.subr.bf16.mxu0 %v937
        %1138 = vmatpush1.bf16.msra.mxu0 %v936
        %1139 = vmatprep.subr.bf16.mxu0 %v935
        %1140 = vmatpush1.bf16.msra.mxu0 %v934
        %1141 = vmatprep.subr.bf16.mxu0 %v933
        %1142 = vmatpush1.bf16.msra.mxu0 %v932
        %1143 = vmatprep.subr.bf16.mxu0 %v931
        %1144 = vmatpush1.bf16.msra.mxu0 %v930
        %1145 = vmatprep.subr.bf16.mxu0 %v929
        %1146 = vmatpush1.bf16.msra.mxu0 %v928
        %1147 = vmatprep.subr.bf16.mxu0 %v959
        %1148 = vmatpush2.bf16.msra.mxu0 %v958
        %1149 = vmatprep.subr.bf16.mxu0 %v957
        %1150 = vmatpush2.bf16.msra.mxu0 %v956
        %1151 = vmatprep.subr.bf16.mxu0 %v955
        %1152 = vmatpush2.bf16.msra.mxu0 %v954
        %1153 = vmatprep.subr.bf16.mxu0 %v953
        %1154 = vmatpush2.bf16.msra.mxu0 %v952
        %1155 = vmatprep.subr.bf16.mxu0 %v951
        %1156 = vmatpush2.bf16.msra.mxu0 %v950
        %1157 = vmatprep.subr.bf16.mxu0 %v949
        %1158 = vmatpush2.bf16.msra.mxu0 %v948
        %1159 = vmatprep.subr.bf16.mxu0 %v947
        %1160 = vmatpush2.bf16.msra.mxu0 %v946
        %1161 = vmatprep.subr.bf16.mxu0 %v945
        %1162 = vmatpush2.bf16.msra.mxu0 %v944
        %1163 = vmatprep.mubr.bf16.mxu0 %v511
        %1164 = vmatmul.mubr.bf16.gmra.mxu0 %v510
        %v1165 = vpop.f32.mrf.mxu0
        %v1166 = vadd.f32 %v627, %v1165
        %v1167 = vpop.f32.mrf.mxu0
        %v1168 = vadd.f32 %v631, %v1167
        %v1169 = vpop.f32.mrf.mxu0
        %v1170 = vadd.f32 %v627, %v1169
        %v1171 = vpop.f32.mrf.mxu0
        %v1172 = vadd.f32 %v631, %v1171
        %1173 = vmatprep.mubr.bf16.mxu0 %v518
        %1174 = vmatmul.mubr.bf16.gmra.mxu0 %v517
        %v1175 = vpop.f32.mrf.mxu0
        %v1176 = vadd.f32 %v627, %v1175
        %v1177 = vpop.f32.mrf.mxu0
        %v1178 = vadd.f32 %v631, %v1177
        %v1179 = vpop.f32.mrf.mxu0
        %v1180 = vadd.f32 %v627, %v1179
        %v1181 = vpop.f32.mrf.mxu0
        %v1182 = vadd.f32 %v631, %v1181
        %1183 = vdwg.mxu0
        %1184 = vmatprep.subr.bf16.mxu0 %v975
        %1185 = vmatpush1.bf16.msra.mxu0 %v974
        %1186 = vmatprep.subr.bf16.mxu0 %v973
        %1187 = vmatpush1.bf16.msra.mxu0 %v972
        %1188 = vmatprep.subr.bf16.mxu0 %v971
        %1189 = vmatpush1.bf16.msra.mxu0 %v970
        %1190 = vmatprep.subr.bf16.mxu0 %v969
        %1191 = vmatpush1.bf16.msra.mxu0 %v968
        %1192 = vmatprep.subr.bf16.mxu0 %v967
        %1193 = vmatpush1.bf16.msra.mxu0 %v966
        %1194 = vmatprep.subr.bf16.mxu0 %v965
        %1195 = vmatpush1.bf16.msra.mxu0 %v964
        %1196 = vmatprep.subr.bf16.mxu0 %v963
        %1197 = vmatpush1.bf16.msra.mxu0 %v962
        %1198 = vmatprep.subr.bf16.mxu0 %v961
        %1199 = vmatpush1.bf16.msra.mxu0 %v960
        %1200 = vmatprep.subr.bf16.mxu0 %v991
        %1201 = vmatpush2.bf16.msra.mxu0 %v990
        %1202 = vmatprep.subr.bf16.mxu0 %v989
        %1203 = vmatpush2.bf16.msra.mxu0 %v988
        %1204 = vmatprep.subr.bf16.mxu0 %v987
        %1205 = vmatpush2.bf16.msra.mxu0 %v986
        %1206 = vmatprep.subr.bf16.mxu0 %v985
        %1207 = vmatpush2.bf16.msra.mxu0 %v984
        %1208 = vmatprep.subr.bf16.mxu0 %v983
        %1209 = vmatpush2.bf16.msra.mxu0 %v982
        %1210 = vmatprep.subr.bf16.mxu0 %v981
        %1211 = vmatpush2.bf16.msra.mxu0 %v980
        %1212 = vmatprep.subr.bf16.mxu0 %v979
        %1213 = vmatpush2.bf16.msra.mxu0 %v978
        %1214 = vmatprep.subr.bf16.mxu0 %v977
        %1215 = vmatpush2.bf16.msra.mxu0 %v976
        %1216 = vmatprep.mubr.bf16.mxu0 %v513
        %1217 = vmatmul.mubr.bf16.gmra.mxu0 %v512
        %v1218 = vpop.f32.mrf.mxu0
        %v1219 = vadd.f32 %v1166, %v1218
        %v1220 = vpop.f32.mrf.mxu0
        %v1221 = vadd.f32 %v1168, %v1220
        %v1222 = vpop.f32.mrf.mxu0
        %v1223 = vadd.f32 %v1170, %v1222
        %v1224 = vpop.f32.mrf.mxu0
        %v1225 = vadd.f32 %v1172, %v1224
        %1226 = vmatprep.mubr.bf16.mxu0 %v520
        %1227 = vmatmul.mubr.bf16.gmra.mxu0 %v519
        %v1228 = vpop.f32.mrf.mxu0
        %v1229 = vadd.f32 %v1176, %v1228
        %v1230 = vpop.f32.mrf.mxu0
        %v1231 = vadd.f32 %v1178, %v1230
        %v1232 = vpop.f32.mrf.mxu0
        %v1233 = vadd.f32 %v1180, %v1232
        %v1234 = vpop.f32.mrf.mxu0
        %v1235 = vadd.f32 %v1182, %v1234
        %1236 = vdwg.mxu0
        %1237 = vmatprep.subr.bf16.mxu0 %v1007
        %1238 = vmatpush1.bf16.msra.mxu0 %v1006
        %1239 = vmatprep.subr.bf16.mxu0 %v1005
        %1240 = vmatpush1.bf16.msra.mxu0 %v1004
        %1241 = vmatprep.subr.bf16.mxu0 %v1003
        %1242 = vmatpush1.bf16.msra.mxu0 %v1002
        %1243 = vmatprep.subr.bf16.mxu0 %v1001
        %1244 = vmatpush1.bf16.msra.mxu0 %v1000
        %1245 = vmatprep.subr.bf16.mxu0 %v999
        %1246 = vmatpush1.bf16.msra.mxu0 %v998
        %1247 = vmatprep.subr.bf16.mxu0 %v997
        %1248 = vmatpush1.bf16.msra.mxu0 %v996
        %1249 = vmatprep.subr.bf16.mxu0 %v995
        %1250 = vmatpush1.bf16.msra.mxu0 %v994
        %1251 = vmatprep.subr.bf16.mxu0 %v993
        %1252 = vmatpush1.bf16.msra.mxu0 %v992
        %1253 = vmatprep.subr.bf16.mxu0 %v1023
        %1254 = vmatpush2.bf16.msra.mxu0 %v1022
        %1255 = vmatprep.subr.bf16.mxu0 %v1021
        %1256 = vmatpush2.bf16.msra.mxu0 %v1020
        %1257 = vmatprep.subr.bf16.mxu0 %v1019
        %1258 = vmatpush2.bf16.msra.mxu0 %v1018
        %1259 = vmatprep.subr.bf16.mxu0 %v1017
        %1260 = vmatpush2.bf16.msra.mxu0 %v1016
        %1261 = vmatprep.subr.bf16.mxu0 %v1015
        %1262 = vmatpush2.bf16.msra.mxu0 %v1014
        %1263 = vmatprep.subr.bf16.mxu0 %v1013
        %1264 = vmatpush2.bf16.msra.mxu0 %v1012
        %1265 = vmatprep.subr.bf16.mxu0 %v1011
        %1266 = vmatpush2.bf16.msra.mxu0 %v1010
        %1267 = vmatprep.subr.bf16.mxu0 %v1009
        %1268 = vmatpush2.bf16.msra.mxu0 %v1008
        %1269 = vmatprep.mubr.bf16.mxu0 %v515
        %1270 = vmatmul.mubr.bf16.gmra.mxu0 %v514
        %v1271 = vpop.f32.mrf.mxu0
        %v1272 = vadd.f32 %v1219, %v1271
        %v1273 = vpop.f32.mrf.mxu0
        %v1274 = vadd.f32 %v1221, %v1273
        %v1275 = vpop.f32.mrf.mxu0
        %v1276 = vadd.f32 %v1223, %v1275
        %v1277 = vpop.f32.mrf.mxu0
        %v1278 = vadd.f32 %v1225, %v1277
        %1279 = vmatprep.mubr.bf16.mxu0 %v522
        %1280 = vmatmul.mubr.bf16.gmra.mxu0 %v521
        %v1281 = vpop.f32.mrf.mxu0
        %v1282 = vadd.f32 %v1229, %v1281
        %v1283 = vpop.f32.mrf.mxu0
        %v1284 = vadd.f32 %v1231, %v1283
        %v1285 = vpop.f32.mrf.mxu0
        %v1286 = vadd.f32 %v1233, %v1285
        %v1287 = vpop.f32.mrf.mxu0
        %v1288 = vadd.f32 %v1235, %v1287
        %1289 = vdwg.mxu0
        %1290 = vmatprep.subr.bf16.mxu0 0
        %1291 = vmatpush1.bf16.msra.mxu0 0
        %1292 = vmatprep.subr.bf16.mxu0 0
        %1293 = vmatpush1.bf16.msra.mxu0 0
        %1294 = vmatprep.subr.bf16.mxu0 0
        %1295 = vmatpush1.bf16.msra.mxu0 0
        %1296 = vmatprep.subr.bf16.mxu0 0
        %1297 = vmatpush1.bf16.msra.mxu0 0
        %1298 = vmatprep.subr.bf16.mxu0 0
        %1299 = vmatpush1.bf16.msra.mxu0 0
        %1300 = vmatprep.subr.bf16.mxu0 0
        %1301 = vmatpush1.bf16.msra.mxu0 0
        %1302 = vmatprep.subr.bf16.mxu0 0
        %1303 = vmatpush1.bf16.msra.mxu0 0
        %1304 = vmatprep.subr.bf16.mxu0 %v1025
        %1305 = vmatpush1.bf16.msra.mxu0 %v1024
        %1306 = vmatprep.subr.bf16.mxu0 0
        %1307 = vmatpush2.bf16.msra.mxu0 0
        %1308 = vmatprep.subr.bf16.mxu0 0
        %1309 = vmatpush2.bf16.msra.mxu0 0
        %1310 = vmatprep.subr.bf16.mxu0 0
        %1311 = vmatpush2.bf16.msra.mxu0 0
        %1312 = vmatprep.subr.bf16.mxu0 0
        %1313 = vmatpush2.bf16.msra.mxu0 0
        %1314 = vmatprep.subr.bf16.mxu0 0
        %1315 = vmatpush2.bf16.msra.mxu0 0
        %1316 = vmatprep.subr.bf16.mxu0 0
        %1317 = vmatpush2.bf16.msra.mxu0 0
        %1318 = vmatprep.subr.bf16.mxu0 0
        %1319 = vmatpush2.bf16.msra.mxu0 0
        %1320 = vmatprep.subr.bf16.mxu0 0
        %1321 = vmatpush2.bf16.msra.mxu0 0
        %1322 = vmatprep.mubr.bf16.mxu0 0
        %1323 = vmatmul.mubr.bf16.gmra.mxu0 %v1126
        %v1324 = vpop.f32.mrf.mxu0
        %v1325 = vadd.f32 %v1272, %v1324
        %v1326 = vpop.f32.mrf.mxu0
        %v1327 = vadd.f32 %v1274, %v1326
        %v1328 = vpop.f32.mrf.mxu0
        %v1329 = vadd.f32 %v1276, %v1328
        %v1330 = vpop.f32.mrf.mxu0
        %v1331 = vadd.f32 %v1278, %v1330
        %1332 = vmatprep.mubr.bf16.mxu0 0
        %1333 = vmatmul.mubr.bf16.gmra.mxu0 %v1129
        %v1334 = vpop.f32.mrf.mxu0
        %v1335 = vadd.f32 %v1282, %v1334
        %v1336 = vpop.f32.mrf.mxu0
        %v1337 = vadd.f32 %v1284, %v1336
        %v1338 = vpop.f32.mrf.mxu0
        %v1339 = vadd.f32 %v1286, %v1338
        %v1340 = vpop.f32.mrf.mxu0
        %v1341 = vadd.f32 %v1288, %v1340
        %1342 = vdwg.mxu0
        %v1343 = vmax.f32 %v1325, 0.0
        %v1344 = vmax.f32 %v1327, 0.0
        %v1345 = vmax.f32 %v1329, 0.0
        %v1346 = vmax.f32 %v1331, 0.0
        %v1347 = vmax.f32 %v1335, 0.0
        %v1348 = vmax.f32 %v1337, 0.0
        %v1349 = vmax.f32 %v1339, 0.0
        %v1350 = vmax.f32 %v1341, 0.0
        %v1351 = vpack.c.bf16 %v1345, %v1343
        %v1352 = vpack.c.bf16 %v1346, %v1344
        %v1353 = vpack.c.bf16 %v1349, %v1347
        %v1354 = vpack.c.bf16 %v1350, %v1348
        %v1355 = vld [vmem:[#allocation7] sm:$0xf]
        %v1356 = vld [vmem:[#allocation7 + $0x4] sm:$0xf]
        %v1357 = vld [vmem:[#allocation7 + $0x8] sm:$0xf]
        %v1358 = vld [vmem:[#allocation7 + $0xc] sm:$0xf]
        %v1359 = vld [vmem:[#allocation7 + $0x10] sm:$0xf]
        %v1360 = vld [vmem:[#allocation7 + $0x14] sm:$0xf]
        %v1361 = vld [vmem:[#allocation7 + $0x18] sm:$0xf]
        %v1362 = vld [vmem:[#allocation7 + $0x1c] sm:$0xf]
        %v1363 = vld [vmem:[#allocation7 + $0x20] sm:$0xf]
        %v1364 = vld [vmem:[#allocation7 + $0x24] sm:$0xf]
        %v1365 = vld [vmem:[#allocation7 + $0x28] sm:$0xf]
        %v1366 = vld [vmem:[#allocation7 + $0x2c] sm:$0xf]
        %v1367 = vld [vmem:[#allocation7 + $0x30] sm:$0xf]
        %v1368 = vld [vmem:[#allocation7 + $0x34] sm:$0xf]
        %v1369 = vld [vmem:[#allocation7 + $0x38] sm:$0xf]
        %v1370 = vld [vmem:[#allocation7 + $0x3c] sm:$0xf]
        %v1371 = vld [vmem:[#allocation7 + $0x40] sm:$0xf]
        %v1372 = vld [vmem:[#allocation7 + $0x44] sm:$0xf]
        %v1373 = vld [vmem:[#allocation7 + $0x48] sm:$0xf]
        %v1374 = vld [vmem:[#allocation7 + $0x4c] sm:$0xf]
        %v1375 = vld [vmem:[#allocation7 + $0x50] sm:$0xf]
        %v1376 = vld [vmem:[#allocation7 + $0x54] sm:$0xf]
        %v1377 = vld [vmem:[#allocation7 + $0x58] sm:$0xf]
        %v1378 = vld [vmem:[#allocation7 + $0x5c] sm:$0xf]
        %v1379 = vld [vmem:[#allocation7 + $0x60] sm:$0xf]
        %v1380 = vld [vmem:[#allocation7 + $0x64] sm:$0xf]
        %v1381 = vld [vmem:[#allocation7 + $0x68] sm:$0xf]
        %v1382 = vld [vmem:[#allocation7 + $0x6c] sm:$0xf]
        %v1383 = vld [vmem:[#allocation7 + $0x70] sm:$0xf]
        %v1384 = vld [vmem:[#allocation7 + $0x74] sm:$0xf]
        %v1385 = vld [vmem:[#allocation7 + $0x78] sm:$0xf]
        %v1386 = vld [vmem:[#allocation7 + $0x7c] sm:$0xf]
        %v1387 = vld [vmem:[%s4] sm:$0x1]
        %v1389 = vlaneseq
        %v1390 = vshrl.u32 %v1389, 7
        %v1391 = vsub.s32 0, %v1390
        %v1392 = vrot.slane %v1387, %v1391
        %v1426 = vunpack.c.l.b16 %v1355
        %v1427 = vunpack.c.l.b16 %v1356
        %v1428 = vunpack.c.l.b16 %v1357
        %v1429 = vunpack.c.l.b16 %v1358
        %v1430 = vunpack.c.l.b16 %v1359
        %v1431 = vunpack.c.l.b16 %v1360
        %v1432 = vunpack.c.l.b16 %v1361
        %v1433 = vunpack.c.l.b16 %v1362
        %v1434 = vunpack.c.l.b16 %v1363
        %v1435 = vunpack.c.l.b16 %v1364
        %v1436 = vunpack.c.l.b16 %v1365
        %v1437 = vunpack.c.l.b16 %v1366
        %v1438 = vunpack.c.l.b16 %v1367
        %v1439 = vunpack.c.l.b16 %v1368
        %v1440 = vunpack.c.l.b16 %v1369
        %v1441 = vunpack.c.l.b16 %v1370
        %v1442 = vunpack.c.l.b16 %v1371
        %v1443 = vunpack.c.l.b16 %v1372
        %v1444 = vunpack.c.l.b16 %v1373
        %v1445 = vunpack.c.l.b16 %v1374
        %v1446 = vunpack.c.l.b16 %v1375
        %v1447 = vunpack.c.l.b16 %v1376
        %v1448 = vunpack.c.l.b16 %v1377
        %v1449 = vunpack.c.l.b16 %v1378
        %v1450 = vunpack.c.l.b16 %v1379
        %v1451 = vunpack.c.l.b16 %v1380
        %v1452 = vunpack.c.l.b16 %v1381
        %v1453 = vunpack.c.l.b16 %v1382
        %v1454 = vunpack.c.l.b16 %v1383
        %v1455 = vunpack.c.l.b16 %v1384
        %v1456 = vunpack.c.l.b16 %v1385
        %v1457 = vunpack.c.l.b16 %v1386
        %v1458 = vpack.c.b16 %v1427, %v1426
        %v1459 = vpack.c.b16 %v1429, %v1428
        %v1460 = vpack.c.b16 %v1431, %v1430
        %v1461 = vpack.c.b16 %v1433, %v1432
        %v1462 = vpack.c.b16 %v1435, %v1434
        %v1463 = vpack.c.b16 %v1437, %v1436
        %v1464 = vpack.c.b16 %v1439, %v1438
        %v1465 = vpack.c.b16 %v1441, %v1440
        %v1466 = vpack.c.b16 %v1443, %v1442
        %v1467 = vpack.c.b16 %v1445, %v1444
        %v1468 = vpack.c.b16 %v1447, %v1446
        %v1469 = vpack.c.b16 %v1449, %v1448
        %v1470 = vpack.c.b16 %v1451, %v1450
        %v1471 = vpack.c.b16 %v1453, %v1452
        %v1472 = vpack.c.b16 %v1455, %v1454
        %v1473 = vpack.c.b16 %v1457, %v1456
        %1490 = vmatprep.subr.bf16.mxu0 0
        %1491 = vmatpush1.bf16.msra.mxu0 %v1465
        %1492 = vmatprep.subr.bf16.mxu0 0
        %1493 = vmatpush1.bf16.msra.mxu0 %v1464
        %1494 = vmatprep.subr.bf16.mxu0 0
        %1495 = vmatpush1.bf16.msra.mxu0 %v1463
        %1496 = vmatprep.subr.bf16.mxu0 0
        %1497 = vmatpush1.bf16.msra.mxu0 %v1462
        %1498 = vmatprep.subr.bf16.mxu0 0
        %1499 = vmatpush1.bf16.msra.mxu0 %v1461
        %1500 = vmatprep.subr.bf16.mxu0 0
        %1501 = vmatpush1.bf16.msra.mxu0 %v1460
        %1502 = vmatprep.subr.bf16.mxu0 0
        %1503 = vmatpush1.bf16.msra.mxu0 %v1459
        %1504 = vmatprep.subr.bf16.mxu0 0
        %1505 = vmatpush1.bf16.msra.mxu0 %v1458
        %1506 = vmatprep.subr.bf16.mxu0 0
        %1507 = vmatpush2.bf16.msra.mxu0 %v1473
        %1508 = vmatprep.subr.bf16.mxu0 0
        %1509 = vmatpush2.bf16.msra.mxu0 %v1472
        %1510 = vmatprep.subr.bf16.mxu0 0
        %1511 = vmatpush2.bf16.msra.mxu0 %v1471
        %1512 = vmatprep.subr.bf16.mxu0 0
        %1513 = vmatpush2.bf16.msra.mxu0 %v1470
        %1514 = vmatprep.subr.bf16.mxu0 0
        %1515 = vmatpush2.bf16.msra.mxu0 %v1469
        %1516 = vmatprep.subr.bf16.mxu0 0
        %1517 = vmatpush2.bf16.msra.mxu0 %v1468
        %1518 = vmatprep.subr.bf16.mxu0 0
        %1519 = vmatpush2.bf16.msra.mxu0 %v1467
        %1520 = vmatprep.subr.bf16.mxu0 0
        %1521 = vmatpush2.bf16.msra.mxu0 %v1466
        %1522 = vmatprep.mubr.bf16.mxu0 %v1352
        %1523 = vmatmul.mubr.bf16.gmra.mxu0 %v1351
        %v1524 = vpop.f32.mrf.mxu0
        %v1525 = vadd.f32 %v1392, %v1524
        %v1526 = vpop.f32.mrf.mxu0
        %v1527 = vpop.f32.mrf.mxu0
        %v1528 = vadd.f32 %v1392, %v1527
        %v1529 = vpop.f32.mrf.mxu0
        %1530 = vmatprep.mubr.bf16.mxu0 %v1354
        %1531 = vmatmul.mubr.bf16.gmra.mxu0 %v1353
        %v1532 = vpop.f32.mrf.mxu0
        %v1533 = vadd.f32 %v1392, %v1532
        %v1534 = vpop.f32.mrf.mxu0
        %v1535 = vpop.f32.mrf.mxu0
        %v1536 = vadd.f32 %v1392, %v1535
        %v1537 = vpop.f32.mrf.mxu0
        %1538 = vdwg.mxu0
        %v1539 = vmax.f32 %v1525, 0.0
        %v1540 = vmax.f32 %v1528, 0.0
        %v1541 = vmax.f32 %v1533, 0.0
        %v1542 = vmax.f32 %v1536, 0.0
        %v1543 = vpack.c.bf16 %v1540, %v1539
        %v1544 = vpack.c.bf16 %v1542, %v1541
        %v1545 = vld [vmem:[#allocation8] sm:$0xf]
        %v1546 = vld [vmem:[#allocation8 + $0x4] sm:$0xf]
        %v1547 = vld [vmem:[#allocation8 + $0x8] sm:$0xf]
        %v1548 = vld [vmem:[#allocation8 + $0xc] sm:$0xf]
        %v1549 = vld [vmem:[#allocation8 + $0x10] sm:$0xf]
        %v1550 = vld [vmem:[#allocation8 + $0x14] sm:$0xf]
        %v1551 = vld [vmem:[#allocation8 + $0x18] sm:$0xf]
        %v1552 = vld [vmem:[#allocation8 + $0x1c] sm:$0xf]
        %v1553 = vld [vmem:[#allocation8 + $0x20] sm:$0xf]
        %v1554 = vld [vmem:[#allocation8 + $0x24] sm:$0xf]
        %v1555 = vld [vmem:[#allocation8 + $0x28] sm:$0xf]
        %v1556 = vld [vmem:[#allocation8 + $0x2c] sm:$0xf]
        %v1557 = vld [vmem:[#allocation8 + $0x30] sm:$0xf]
        %v1558 = vld [vmem:[#allocation8 + $0x34] sm:$0xf]
        %v1559 = vld [vmem:[#allocation8 + $0x38] sm:$0xf]
        %v1560 = vld [vmem:[#allocation8 + $0x3c] sm:$0xf]
        %v1561 = vld [vmem:[%s6] sm:$0x1]
        %v1563 = vlaneseq
        %v1564 = vshrl.u32 %v1563, 7
        %v1565 = vsub.s32 0, %v1564
        %v1566 = vrot.slane %v1561, %v1565
        %v1584 = vunpack.c.l.b16 %v1545
        %v1585 = vunpack.c.l.b16 %v1546
        %v1586 = vunpack.c.l.b16 %v1547
        %v1587 = vunpack.c.l.b16 %v1548
        %v1588 = vunpack.c.l.b16 %v1549
        %v1589 = vunpack.c.l.b16 %v1550
        %v1590 = vunpack.c.l.b16 %v1551
        %v1591 = vunpack.c.l.b16 %v1552
        %v1592 = vunpack.c.l.b16 %v1553
        %v1593 = vunpack.c.l.b16 %v1554
        %v1594 = vunpack.c.l.b16 %v1555
        %v1595 = vunpack.c.l.b16 %v1556
        %v1596 = vunpack.c.l.b16 %v1557
        %v1597 = vunpack.c.l.b16 %v1558
        %v1598 = vunpack.c.l.b16 %v1559
        %v1599 = vunpack.c.l.b16 %v1560
        %v1600 = vpack.c.b16 %v1585, %v1584
        %v1601 = vpack.c.b16 %v1587, %v1586
        %v1602 = vpack.c.b16 %v1589, %v1588
        %v1603 = vpack.c.b16 %v1591, %v1590
        %v1604 = vpack.c.b16 %v1593, %v1592
        %v1605 = vpack.c.b16 %v1595, %v1594
        %v1606 = vpack.c.b16 %v1597, %v1596
        %v1607 = vpack.c.b16 %v1599, %v1598
        %1616 = vmatprep.subr.bf16.mxu0 0
        %1617 = vmatpush1.bf16.msra.mxu0 %v1607
        %1618 = vmatprep.subr.bf16.mxu0 0
        %1619 = vmatpush1.bf16.msra.mxu0 %v1606
        %1620 = vmatprep.subr.bf16.mxu0 0
        %1621 = vmatpush1.bf16.msra.mxu0 %v1605
        %1622 = vmatprep.subr.bf16.mxu0 0
        %1623 = vmatpush1.bf16.msra.mxu0 %v1604
        %1624 = vmatprep.subr.bf16.mxu0 0
        %1625 = vmatpush1.bf16.msra.mxu0 %v1603
        %1626 = vmatprep.subr.bf16.mxu0 0
        %1627 = vmatpush1.bf16.msra.mxu0 %v1602
        %1628 = vmatprep.subr.bf16.mxu0 0
        %1629 = vmatpush1.bf16.msra.mxu0 %v1601
        %1630 = vmatprep.subr.bf16.mxu0 0
        %1631 = vmatpush1.bf16.msra.mxu0 %v1600
        %1632 = vmatprep.subr.bf16.mxu0 0
        %1633 = vmatpush2.bf16.msra.mxu0 0
        %1634 = vmatprep.subr.bf16.mxu0 0
        %1635 = vmatpush2.bf16.msra.mxu0 0
        %1636 = vmatprep.subr.bf16.mxu0 0
        %1637 = vmatpush2.bf16.msra.mxu0 0
        %1638 = vmatprep.subr.bf16.mxu0 0
        %1639 = vmatpush2.bf16.msra.mxu0 0
        %1640 = vmatprep.subr.bf16.mxu0 0
        %1641 = vmatpush2.bf16.msra.mxu0 0
        %1642 = vmatprep.subr.bf16.mxu0 0
        %1643 = vmatpush2.bf16.msra.mxu0 0
        %1644 = vmatprep.subr.bf16.mxu0 0
        %1645 = vmatpush2.bf16.msra.mxu0 0
        %1646 = vmatprep.subr.bf16.mxu0 0
        %1647 = vmatpush2.bf16.msra.mxu0 0
        %1648 = vmatprep.mubr.bf16.mxu0 0
        %1649 = vmatmul.mubr.bf16.gmra.mxu0 %v1543
        %v1650 = vpop.f32.mrf.mxu0
        %v1651 = vadd.f32 %v1566, %v1650
        %v1652 = vpop.f32.mrf.mxu0
        %v1653 = vpop.f32.mrf.mxu0
        %v1654 = vadd.f32 %v1566, %v1653
        %v1655 = vpop.f32.mrf.mxu0
        %1656 = vmatprep.mubr.bf16.mxu0 0
        %1657 = vmatmul.mubr.bf16.gmra.mxu0 %v1544
        %v1658 = vpop.f32.mrf.mxu0
        %v1659 = vadd.f32 %v1566, %v1658
        %v1660 = vpop.f32.mrf.mxu0
        %v1661 = vpop.f32.mrf.mxu0
        %v1662 = vadd.f32 %v1566, %v1661
        %v1663 = vpop.f32.mrf.mxu0
        %1664 = vdwg.mxu0
        %v1665 = vmax.f32 %v1651, 0.0
        %v1666 = vmax.f32 %v1654, 0.0
        %v1667 = vmax.f32 %v1659, 0.0
        %v1668 = vmax.f32 %v1662, 0.0
        %v1669 = vpack.c.bf16 %v1666, %v1665
        %v1670 = vpack.c.bf16 %v1668, %v1667
        %v1671 = vld [vmem:[#allocation10] sm:$0xf]
        %v1672 = vld [vmem:[#allocation10 + $0x4] sm:$0xf]
        %v1673 = vld [vmem:[#allocation10 + $0x8] sm:$0xf]
        %v1674 = vld [vmem:[#allocation10 + $0xc] sm:$0xf]
        %v1675 = vld [vmem:[#allocation10 + $0x10] sm:$0xf]
        %v1676 = vld [vmem:[#allocation10 + $0x14] sm:$0xf]
        %v1677 = vld [vmem:[#allocation10 + $0x18] sm:$0xf]
        %v1678 = vld [vmem:[#allocation10 + $0x1c] sm:$0xf]
        %v1679 = vld [vmem:[#allocation10 + $0x20] sm:$0xf]
        %v1680 = vld [vmem:[#allocation10 + $0x24] sm:$0xf]
        %v1681 = vld [vmem:[#allocation10 + $0x28] sm:$0xf]
        %v1682 = vld [vmem:[#allocation10 + $0x2c] sm:$0xf]
        %v1683 = vld [vmem:[#allocation10 + $0x30] sm:$0xf]
        %v1684 = vld [vmem:[#allocation10 + $0x34] sm:$0xf]
        %v1685 = vld [vmem:[#allocation10 + $0x38] sm:$0xf]
        %v1686 = vld [vmem:[#allocation10 + $0x3c] sm:$0xf]
        %v1687 = vld [vmem:[%s8] sm:$0x1]
        %v1689 = vlaneseq
        %v1690 = vshrl.u32 %v1689, 7
        %v1691 = vsub.s32 0, %v1690
        %v1692 = vrot.slane %v1687, %v1691
        %v1710 = vunpack.c.l.b16 %v1671
        %v1711 = vunpack.c.l.b16 %v1672
        %v1712 = vunpack.c.l.b16 %v1673
        %v1713 = vunpack.c.l.b16 %v1674
        %v1714 = vunpack.c.l.b16 %v1675
        %v1715 = vunpack.c.l.b16 %v1676
        %v1716 = vunpack.c.l.b16 %v1677
        %v1717 = vunpack.c.l.b16 %v1678
        %v1718 = vunpack.c.l.b16 %v1679
        %v1719 = vunpack.c.l.b16 %v1680
        %v1720 = vunpack.c.l.b16 %v1681
        %v1721 = vunpack.c.l.b16 %v1682
        %v1722 = vunpack.c.l.b16 %v1683
        %v1723 = vunpack.c.l.b16 %v1684
        %v1724 = vunpack.c.l.b16 %v1685
        %v1725 = vunpack.c.l.b16 %v1686
        %v1726 = vpack.c.b16 %v1711, %v1710
        %v1727 = vpack.c.b16 %v1713, %v1712
        %v1728 = vpack.c.b16 %v1715, %v1714
        %v1729 = vpack.c.b16 %v1717, %v1716
        %v1730 = vpack.c.b16 %v1719, %v1718
        %v1731 = vpack.c.b16 %v1721, %v1720
        %v1732 = vpack.c.b16 %v1723, %v1722
        %v1733 = vpack.c.b16 %v1725, %v1724
        %1742 = vmatprep.subr.bf16.mxu0 0
        %1743 = vmatpush1.bf16.msra.mxu0 %v1733
        %1744 = vmatprep.subr.bf16.mxu0 0
        %1745 = vmatpush1.bf16.msra.mxu0 %v1732
        %1746 = vmatprep.subr.bf16.mxu0 0
        %1747 = vmatpush1.bf16.msra.mxu0 %v1731
        %1748 = vmatprep.subr.bf16.mxu0 0
        %1749 = vmatpush1.bf16.msra.mxu0 %v1730
        %1750 = vmatprep.subr.bf16.mxu0 0
        %1751 = vmatpush1.bf16.msra.mxu0 %v1729
        %1752 = vmatprep.subr.bf16.mxu0 0
        %1753 = vmatpush1.bf16.msra.mxu0 %v1728
        %1754 = vmatprep.subr.bf16.mxu0 0
        %1755 = vmatpush1.bf16.msra.mxu0 %v1727
        %1756 = vmatprep.subr.bf16.mxu0 0
        %1757 = vmatpush1.bf16.msra.mxu0 %v1726
        %1758 = vmatprep.subr.bf16.mxu0 0
        %1759 = vmatpush2.bf16.msra.mxu0 0
        %1760 = vmatprep.subr.bf16.mxu0 0
        %1761 = vmatpush2.bf16.msra.mxu0 0
        %1762 = vmatprep.subr.bf16.mxu0 0
        %1763 = vmatpush2.bf16.msra.mxu0 0
        %1764 = vmatprep.subr.bf16.mxu0 0
        %1765 = vmatpush2.bf16.msra.mxu0 0
        %1766 = vmatprep.subr.bf16.mxu0 0
        %1767 = vmatpush2.bf16.msra.mxu0 0
        %1768 = vmatprep.subr.bf16.mxu0 0
        %1769 = vmatpush2.bf16.msra.mxu0 0
        %1770 = vmatprep.subr.bf16.mxu0 0
        %1771 = vmatpush2.bf16.msra.mxu0 0
        %1772 = vmatprep.subr.bf16.mxu0 0
        %1773 = vmatpush2.bf16.msra.mxu0 0
        %1774 = vmatprep.mubr.bf16.mxu0 0
        %1775 = vmatmul.mubr.bf16.gmra.mxu0 %v1669
        %v1776 = vpop.f32.mrf.mxu0
        %v1777 = vadd.f32 %v1692, %v1776
        %v1778 = vpop.f32.mrf.mxu0
        %v1779 = vpop.f32.mrf.mxu0
        %v1780 = vadd.f32 %v1692, %v1779
        %v1781 = vpop.f32.mrf.mxu0
        %1782 = vmatprep.mubr.bf16.mxu0 0
        %1783 = vmatmul.mubr.bf16.gmra.mxu0 %v1670
        %v1784 = vpop.f32.mrf.mxu0
        %v1785 = vadd.f32 %v1692, %v1784
        %v1786 = vpop.f32.mrf.mxu0
        %v1787 = vpop.f32.mrf.mxu0
        %v1788 = vadd.f32 %v1692, %v1787
        %v1789 = vpop.f32.mrf.mxu0
        %1790 = vdwg.mxu0
        %v1791 = vmax.f32 %v1777, 0.0
        %v1792 = vmax.f32 %v1780, 0.0
        %v1793 = vmax.f32 %v1785, 0.0
        %v1794 = vmax.f32 %v1788, 0.0
        %v1795 = vpack.c.bf16 %v1792, %v1791
        %v1796 = vpack.c.bf16 %v1794, %v1793
        %v1797 = vld [vmem:[#allocation11] sm:$0xf]
        %v1798 = vld [vmem:[#allocation11 + $0x4] sm:$0xf]
        %v1799 = vld [vmem:[#allocation11 + $0x8] sm:$0xf]
        %v1800 = vld [vmem:[#allocation11 + $0xc] sm:$0xf]
        %v1801 = vld [vmem:[#allocation11 + $0x10] sm:$0xf]
        %v1802 = vld [vmem:[#allocation11 + $0x14] sm:$0xf]
        %v1803 = vld [vmem:[#allocation11 + $0x18] sm:$0xf]
        %v1804 = vld [vmem:[#allocation11 + $0x1c] sm:$0xf]
        %v1805 = vld [vmem:[#allocation11 + $0x20] sm:$0xf]
        %v1806 = vld [vmem:[#allocation11 + $0x24] sm:$0xf]
        %v1807 = vld [vmem:[#allocation11 + $0x28] sm:$0xf]
        %v1808 = vld [vmem:[#allocation11 + $0x2c] sm:$0xf]
        %v1809 = vld [vmem:[#allocation11 + $0x30] sm:$0xf]
        %v1810 = vld [vmem:[#allocation11 + $0x34] sm:$0xf]
        %v1811 = vld [vmem:[#allocation11 + $0x38] sm:$0xf]
        %v1812 = vld [vmem:[#allocation11 + $0x3c] sm:$0xf]
        %v1813 = vld [vmem:[%s10] sm:$0x1]
        %v1815 = vlaneseq
        %v1816 = vshrl.u32 %v1815, 7
        %v1817 = vsub.s32 0, %v1816
        %v1818 = vrot.slane %v1813, %v1817
        %v1836 = vunpack.c.l.b16 %v1797
        %v1837 = vunpack.c.l.b16 %v1798
        %v1838 = vunpack.c.l.b16 %v1799
        %v1839 = vunpack.c.l.b16 %v1800
        %v1840 = vunpack.c.l.b16 %v1801
        %v1841 = vunpack.c.l.b16 %v1802
        %v1842 = vunpack.c.l.b16 %v1803
        %v1843 = vunpack.c.l.b16 %v1804
        %v1844 = vunpack.c.l.b16 %v1805
        %v1845 = vunpack.c.l.b16 %v1806
        %v1846 = vunpack.c.l.b16 %v1807
        %v1847 = vunpack.c.l.b16 %v1808
        %v1848 = vunpack.c.l.b16 %v1809
        %v1849 = vunpack.c.l.b16 %v1810
        %v1850 = vunpack.c.l.b16 %v1811
        %v1851 = vunpack.c.l.b16 %v1812
        %v1852 = vpack.c.b16 %v1837, %v1836
        %v1853 = vpack.c.b16 %v1839, %v1838
        %v1854 = vpack.c.b16 %v1841, %v1840
        %v1855 = vpack.c.b16 %v1843, %v1842
        %v1856 = vpack.c.b16 %v1845, %v1844
        %v1857 = vpack.c.b16 %v1847, %v1846
        %v1858 = vpack.c.b16 %v1849, %v1848
        %v1859 = vpack.c.b16 %v1851, %v1850
        %1868 = vmatprep.subr.bf16.mxu0 0
        %1869 = vmatpush1.bf16.msra.mxu0 %v1859
        %1870 = vmatprep.subr.bf16.mxu0 0
        %1871 = vmatpush1.bf16.msra.mxu0 %v1858
        %1872 = vmatprep.subr.bf16.mxu0 0
        %1873 = vmatpush1.bf16.msra.mxu0 %v1857
        %1874 = vmatprep.subr.bf16.mxu0 0
        %1875 = vmatpush1.bf16.msra.mxu0 %v1856
        %1876 = vmatprep.subr.bf16.mxu0 0
        %1877 = vmatpush1.bf16.msra.mxu0 %v1855
        %1878 = vmatprep.subr.bf16.mxu0 0
        %1879 = vmatpush1.bf16.msra.mxu0 %v1854
        %1880 = vmatprep.subr.bf16.mxu0 0
        %1881 = vmatpush1.bf16.msra.mxu0 %v1853
        %1882 = vmatprep.subr.bf16.mxu0 0
        %1883 = vmatpush1.bf16.msra.mxu0 %v1852
        %1884 = vmatprep.subr.bf16.mxu0 0
        %1885 = vmatpush2.bf16.msra.mxu0 0
        %1886 = vmatprep.subr.bf16.mxu0 0
        %1887 = vmatpush2.bf16.msra.mxu0 0
        %1888 = vmatprep.subr.bf16.mxu0 0
        %1889 = vmatpush2.bf16.msra.mxu0 0
        %1890 = vmatprep.subr.bf16.mxu0 0
        %1891 = vmatpush2.bf16.msra.mxu0 0
        %1892 = vmatprep.subr.bf16.mxu0 0
        %1893 = vmatpush2.bf16.msra.mxu0 0
        %1894 = vmatprep.subr.bf16.mxu0 0
        %1895 = vmatpush2.bf16.msra.mxu0 0
        %1896 = vmatprep.subr.bf16.mxu0 0
        %1897 = vmatpush2.bf16.msra.mxu0 0
        %1898 = vmatprep.subr.bf16.mxu0 0
        %1899 = vmatpush2.bf16.msra.mxu0 0
        %1900 = vmatprep.mubr.bf16.mxu0 0
        %1901 = vmatmul.mubr.bf16.gmra.mxu0 %v1795
        %v1902 = vpop.f32.mrf.mxu0
        %v1903 = vadd.f32 %v1818, %v1902
        %v1904 = vpop.f32.mrf.mxu0
        %v1905 = vpop.f32.mrf.mxu0
        %v1906 = vadd.f32 %v1818, %v1905
        %v1907 = vpop.f32.mrf.mxu0
        %1908 = vmatprep.mubr.bf16.mxu0 0
        %1909 = vmatmul.mubr.bf16.gmra.mxu0 %v1796
        %v1910 = vpop.f32.mrf.mxu0
        %v1911 = vadd.f32 %v1818, %v1910
        %v1912 = vpop.f32.mrf.mxu0
        %v1913 = vpop.f32.mrf.mxu0
        %v1914 = vadd.f32 %v1818, %v1913
        %v1915 = vpop.f32.mrf.mxu0
        %1916 = vdwg.mxu0
        %1917 = vst [vmem:[%s478] sm:$0xff] %v1903
        %1918 = vst [vmem:[%s478 + $0x8] sm:$0xff] %v1906
        %1919 = vst [vmem:[%s478 + $0x10] sm:$0xff] %v1911
        %1920 = vst [vmem:[%s478 + $0x18] sm:$0xff] %v1914
        %s1921 = sand.u32 %s275, 1
        %s1922 = scalar_lea.sflag [#allocation4], %s1921
        %s1923 = sand.u32 %s275, 1
        %s1924 = smul.addr %s1923, 32
        %s1925 = scalar_lea.vmem [#allocation13], %s1924
        // Predicated region
        $region89: #{tpu_custom_call.1} parent=63 // pred_check
          %p1926 = pneg %p285
        $region90: #{tpu_custom_call.1} parent=63 // pred_check_branch
          %1928 = sbr.rel (%p1926) target = $region92
        $region91: #{tpu_custom_call.1} parent=63 // pred_region
          %s1929 = smul.u32 4, %s31
          %s1931 = ssub.s32 512, 512
          %1932 = vsyncadd %s1922, %s1931
          %s1933 = smul.addr %s1929, 128
          %s1934 = scalar_lea.hbm %s11, %s1933
          %s1935 = sshll.u32 %s1925, 4
          %s1936 = int_to_ptr.vmem [resolvable:$true] %s1935
          %1941 = dma.vmem_to_hbm [thread:$0]  %s1936, 512, %s1934, %s1922, 128, 128, 8
        $region92: #{tpu_custom_call.1} parent=63 // pred_fallthru
          _
      $region64: #{tpu_custom_call.1} parent=5 // pred_fallthru
        _
      %p1942 = scmp.le.s32.totalorder 2, %s26
      // Predicated region
      $region93: #{tpu_custom_call.1} parent=5 // pred_check
        %p1943 = pneg %p1942
      $region94: #{tpu_custom_call.1} parent=5 // pred_check_branch
        %1945 = sbr.rel (%p1943) target = $region96
      $region95: #{tpu_custom_call.1} parent=5 // pred_region
        %s1946 = ssub.s32 %s26, 2
        // Predicated region
        $region97: #{tpu_custom_call.1} parent=95 // pred_check
          %p1947 = pneg %p291
        $region98: #{tpu_custom_call.1} parent=95 // pred_check_branch
          %1949 = sbr.rel (%p1947) target = $region100
        $region99: #{tpu_custom_call.1} parent=95 // pred_region
          %s1950 = sand.u32 %s276, 1
          %s1951 = scalar_lea.sflag [#allocation4], %s1950
          %s1952 = sand.u32 %s276, 1
          %s1953 = smul.addr %s1952, 32
          %s1954 = scalar_lea.vmem [#allocation13], %s1953
          %1955 = dma.done %s1951, 512
        $region100: #{tpu_custom_call.1} parent=95 // pred_fallthru
          _
      $region96: #{tpu_custom_call.1} parent=5 // pred_fallthru
        _
    $region6: #{tpu_custom_call.1} parent=1 // loop_footer
      %s30 = sadd.s32 1, %s26
    $region7: #{tpu_custom_call.1} parent=1 // loop_footer_branch
      %25 = sbr.rel target = $region3
    $region8: #{tpu_custom_call.1} parent=1 // loop_exit
      _
    %1956 = vsyncpa [#allocation3], 1
    %s1957 = scalar_lea.sflag [#allocation3], 1
    %1958 = vsyncpa %s1957, 1
    %1959 = vsyncpa [#allocation6], 1
    %1960 = vsyncpa [#allocation9], 1
    %1961 = vsyncpa [#allocation12], 1
    %1962 = vsyncpa [#allocation4], 1
    %s1963 = scalar_lea.sflag [#allocation4], 1
    %1964 = vsyncpa %s1963, 1

</llo_original>
